<compile_context>
chip_gen: v7x
topology: tpu7x:2x2x1
jax: 0.10.0
libtpu: 0.0.40
codegen_flags: <defaults>
</compile_context>

<pallas_src>
import math

import jax
import jax.numpy as jnp
from jax import lax
from jax.experimental import pallas as pl
from jax.experimental.pallas import tpu as pltpu


# ----------------------------------------------------------------------------
# in-kernel math
# ----------------------------------------------------------------------------
def _attention_pool(x, mask, w1, b1, w2, b2, we, be):
    """AttentionPooler forward for one pooler on one batch tile.

    x  : [TB, S, H] (bf16 or f32)   mask : [TB, S] f32 additive (0 / -1e4)
    w1 : [H, H] (bf16)  b1 : [1, H] f32   w2 : [1, H] f32   b2 : f32 scalar (SMEM)
    we : [H, O] (bf16)  be : [1, O] f32
    returns [TB, O] f32
    """
    TB, S, H = x.shape
    # Merging (TB, S) -> TB*S only touches leading dims (layout preserving).
    x2 = x.reshape(TB * S, H)

    # (1) att Linear-1 + ReLU: bf16 x bf16 MXU matmul, f32 accumulation.
    h = jnp.maximum(
        jnp.dot(x2, w1, preferred_element_type=jnp.float32) + b1, 0.0)       # [TB*S, H]

    # (2) att Linear-2 (H -> 1) as broadcast-mul + lane reduce (VPU + XLU).
    # TODO(synk): at production H (>= 128) compute this logit as an MXU dot against
    # a lane-dense [H, 1] w2 column; at demo H=32 the reduce is negligible and
    # avoids a [TB*S, 1] -> [TB, S] relayout.
    score = jnp.sum((h * w2).reshape(TB, S, H), axis=-1) + b2 + mask         # [TB, S]

    # (3) softmax over S; approximate reciprocal runs on the EUP slot (free
    #     alongside the VPU/MXU work).
    score = score - jnp.max(score, axis=-1, keepdims=True)
    e = jnp.exp(score)
    p = e * pl.reciprocal(jnp.sum(e, axis=-1, keepdims=True), approx=True)   # [TB, S] f32

    # (4) attention-weighted sum over S: cast p to the activation dtype (bf16) so
    #     no f32 copy of the [TB, S, H] tile is materialized; bf16 broadcast-mul +
    #     sublane reduce with f32 accumulation (VPU/XLU -> overlaps the MXU x@w1).
    pooled = jnp.sum(p.astype(x.dtype)[:, :, None] * x, axis=1,
                     dtype=jnp.float32)                                      # [TB, H]

    # (5) embed Linear (H -> O): bf16 x bf16 MXU matmul, f32 accumulation.
    return jnp.dot(pooled.astype(we.dtype), we,
                   preferred_element_type=jnp.float32) + be                  # [TB, O]


def _l2_normalize(v, eps=1e-12):
    # F.normalize(p=2, dim=1):  v / max(||v||, eps) == v * rsqrt(max(||v||^2, eps^2))
    ss = jnp.sum(v * v, axis=-1, keepdims=True)
    return v * lax.rsqrt(jnp.maximum(ss, eps * eps))


def _nbytes(shape, dtype):
    n = 1
    for d in shape:
        n *= int(d)
    return n * jnp.dtype(dtype).itemsize


# ----------------------------------------------------------------------------
# main fused kernel: v-pooler sum over L layers + t-pooler, tiled over batch
# ----------------------------------------------------------------------------
def _fused_poolers(vfeats, vmask, vp, ufeats, tmask, tp, block_b):
    L, B, S_v, H = vfeats.shape
    S_t = ufeats.shape[1]
    O = vp["we"].shape[-1]
    TB = block_b
    n_b = B // TB
    inv_sqrt_l = 1.0 / math.sqrt(L)

    def kernel(vx_ref, vmask_ref, vw1_ref, vb1_ref, vw2_ref, vb2_ref, vwe_ref,
               vbe_ref, ux_ref, tmask_ref, tw1_ref, tb1_ref, tw2_ref, tb2_ref,
               twe_ref, tbe_ref, vn_ref, un_ref):
        l = pl.program_id(1)

        # One visual pooler layer for this (batch-tile, l) grid point.
        pooled = _attention_pool(vx_ref[0], vmask_ref[...], vw1_ref[0],
                                 vb1_ref[0], vw2_ref[0], vb2_ref[l],
                                 vwe_ref[0], vbe_ref[0])

        @pl.when(l == 0)
        def _():
            # First layer initializes the resident accumulator directly (no zeros
            # materialization + read-modify-write), and the text pooler runs once
            # per batch tile (its inputs are single-buffered / DMA'd once per tile).
            vn_ref[...] = pooled
            u = _attention_pool(ux_ref[...], tmask_ref[...], tw1_ref[...],
                                tb1_ref[...], tw2_ref[...], tb2_ref[0],
                                twe_ref[...], tbe_ref[...])
            un_ref[...] = _l2_normalize(u)

        @pl.when(l > 0)
        def _():
            vn_ref[...] += pooled

        @pl.when(l == pl.num_programs(1) - 1)
        def _():
            vn_ref[...] = _l2_normalize(vn_ref[...] * inv_sqrt_l)

    # Single-buffer everything whose block does not change along the inner l axis.
    sb = pl.Buffered(1)
    in_specs = [
        pl.BlockSpec((1, TB, S_v, H), lambda b, l: (l, b, 0, 0)),              # vfeats[l]
        pl.BlockSpec((TB, S_v), lambda b, l: (b, 0), pipeline_mode=sb),        # v mask
        pl.BlockSpec((1, H, H), lambda b, l: (l, 0, 0)),                       # v w1[l]
        pl.BlockSpec((1, 1, H), lambda b, l: (l, 0, 0)),                       # v b1[l]
        pl.BlockSpec((1, 1, H), lambda b, l: (l, 0, 0)),                       # v w2[l]
        pl.BlockSpec(memory_space=pltpu.MemorySpace.SMEM),                     # v b2 (L,)
        pl.BlockSpec((1, H, O), lambda b, l: (l, 0, 0)),                       # v we[l]
        pl.BlockSpec((1, 1, O), lambda b, l: (l, 0, 0)),                       # v be[l]
        pl.BlockSpec((TB, S_t, H), lambda b, l: (b, 0, 0), pipeline_mode=sb),  # u_tfeats
        pl.BlockSpec((TB, S_t), lambda b, l: (b, 0), pipeline_mode=sb),        # t mask
        pl.BlockSpec((H, H), lambda b, l: (0, 0), pipeline_mode=sb),           # t w1
        pl.BlockSpec((1, H), lambda b, l: (0, 0), pipeline_mode=sb),           # t b1
        pl.BlockSpec((1, H), lambda b, l: (0, 0), pipeline_mode=sb),           # t w2
        pl.BlockSpec(memory_space=pltpu.MemorySpace.SMEM),                     # t b2 (1,)
        pl.BlockSpec((H, O), lambda b, l: (0, 0), pipeline_mode=sb),           # t we
        pl.BlockSpec((1, O), lambda b, l: (0, 0), pipeline_mode=sb),           # t be
    ]
    out_specs = [
        pl.BlockSpec((TB, O), lambda b, l: (b, 0)),   # v pooled sum / v_norm (resident)
        pl.BlockSpec((TB, O), lambda b, l: (b, 0)),   # u_norm
    ]

    # Re-derive the scoped-VMEM limit from the actual block sizes (review):
    #   double-buffered per-l blocks + single-buffered constant blocks + outputs,
    #   x4 to cover in-kernel intermediates (h, bf16 products), clamped <= 48 MiB
    #   so >= 16 MiB headroom remains on v7x's 64 MiB physical VMEM (v5e/v6e have
    #   128 MiB; this still lifts their 16/32 MiB scoped defaults when needed).
    adt, wdt = vfeats.dtype, vp["w1"].dtype
    dbl = (_nbytes((1, TB, S_v, H), adt) + _nbytes((1, H, H), wdt)
           + 2 * _nbytes((1, 1, H), jnp.float32) + _nbytes((1, H, O), vp["we"].dtype)
           + _nbytes((1, 1, O), jnp.float32))
    single = (_nbytes((TB, S_v), jnp.float32) + _nbytes((TB, S_t, H), ufeats.dtype)
              + _nbytes((TB, S_t), jnp.float32) + _nbytes((H, H), tp["w1"].dtype)
              + 2 * _nbytes((1, H), jnp.float32) + _nbytes((H, O), tp["we"].dtype)
              + _nbytes((1, O), jnp.float32))
    outs = 2 * 2 * _nbytes((TB, O), jnp.float32)
    est = 2 * dbl + single + outs
    vmem_limit = int(min(max(4 * est + (4 << 20), 16 << 20), 48 << 20))

    grid_spec = pltpu.PrefetchScalarGridSpec(
        num_scalar_prefetch=0,
        grid=(n_b, L),
        in_specs=in_specs,
        out_specs=out_specs,
    )
    return pl.pallas_call(
        kernel,
        out_shape=(jax.ShapeDtypeStruct((B, O), jnp.float32),
                   jax.ShapeDtypeStruct((B, O), jnp.float32)),
        grid_spec=grid_spec,
        compiler_params=pltpu.CompilerParams(
            # batch tiles are independent ("parallel", feeds v7x's 2 TensorCores);
            # L is the accumulator/reduction axis ("arbitrary", last in the grid).
            dimension_semantics=("parallel", "arbitrary"),
            vmem_limit_bytes=vmem_limit,
            # TODO(synk): on v6e, if the trace shows exposed vfeats DMA, bump the
            # vfeats BlockSpec to pipeline_mode=pl.Buffered(3) and raise the limit.
        ),
    )(vfeats, vmask, vp["w1"], vp["b1"], vp["w2"], vp["b2"], vp["we"], vp["be"],
      ufeats, tmask, tp["w1"], tp["b1"], tp["w2"], tp["b2"], tp["we"], tp["be"])


# ----------------------------------------------------------------------------
# tiny follow-up kernel: similarity = u_norm @ v_norm^T   (needs all batch tiles)
# ----------------------------------------------------------------------------
def _sim_kernel(u_ref, vt_ref, sim_ref):
    # v is pre-transposed in the wrapper so the MXU sees [B,O] x [O,B] with no
    # in-kernel XLU transpose (review item).
    sim_ref[...] = jnp.dot(u_ref[...], vt_ref[...],
                           preferred_element_type=jnp.float32)


def _similarity(u_norm, v_norm):
    B, O = u_norm.shape
    # TODO(synk): at production sizes pad the sim last dim (B) to a multiple of 128
    # lanes to avoid masked partial stores; harmless at these shapes.
    return pl.pallas_call(
        _sim_kernel,
        out_shape=jax.ShapeDtypeStruct((B, B), jnp.float32),
        grid_spec=pltpu.PrefetchScalarGridSpec(
            num_scalar_prefetch=0,
            grid=(1,),
            in_specs=[pl.BlockSpec((B, O), lambda i: (0, 0)),
                      pl.BlockSpec((O, B), lambda i: (0, 0))],
            out_specs=pl.BlockSpec((B, B), lambda i: (0, 0)),
        ),
        compiler_params=pltpu.CompilerParams(
            dimension_semantics=("arbitrary",)),
    )(u_norm, v_norm.T)


# ----------------------------------------------------------------------------
# module wrapper (glue in plain JAX)
# ----------------------------------------------------------------------------
def multimodal_similarity_forward(u_tfeats, ext_u_tmasks, vfeats_arr, ext_vmasks,
                                  t_params, v_params, training=True, block_b=None):
    """vfeats_arr: [L, B, S_v, H]; ext masks: [B, 1, 1, S] additive (0 / -1e4).

    Activations and w1/we may be bf16 (halves HBM->VMEM DMA, bf16 MXU path);
    all accumulation stays f32 inside the kernel.
    """
    B = u_tfeats.shape[0]
    if block_b is None:
        # Whole batch for small B; otherwise a multiple of 8 that divides B, which
        # exposes a "parallel" axis (v7x 2-TC sharding) and bounds VMEM per tile.
        block_b = B if (B < 16 or B % 8 != 0) else 8
    assert B % block_b == 0, (B, block_b)

    vmask2d = ext_vmasks.reshape(B, -1).astype(jnp.float32)
    tmask2d = ext_u_tmasks.reshape(B, -1).astype(jnp.float32)
    v_norm, u_norm = _fused_poolers(vfeats_arr, vmask2d, v_params,
                                    u_tfeats, tmask2d, t_params, block_b)
    if training:
        return {"output": _similarity(u_norm, v_norm)}
    return {"output": [v_norm, u_norm]}        # matches PyTorch eval: [vfeats, u_tfeats]


# ----------------------------------------------------------------------------
# pure-JAX reference (for correctness check)
# ----------------------------------------------------------------------------
_HP = lax.Precision.HIGHEST


def _ref_pool(x, mask2d, w1, b1, w2, b2, we, be):
    xf = x.astype(jnp.float32)
    h = jnp.maximum(
        jnp.einsum("bsh,hk->bsk", xf, w1.astype(jnp.float32), precision=_HP) + b1, 0.0)
    score = jnp.einsum("bsk,k->bs", h, w2[0], precision=_HP) + b2 + mask2d
    p = jax.nn.softmax(score, axis=-1)
    pooled = jnp.einsum("bs,bsh->bh", p, xf, precision=_HP)
    return jnp.einsum("bh,ho->bo", pooled, we.astype(jnp.float32), precision=_HP) + be


def _ref_forward(u_tfeats, ext_u_tmasks, vfeats_arr, ext_vmasks, t_params, v_params):
    L, B = vfeats_arr.shape[0], u_tfeats.shape[0]
    vmask2d = ext_vmasks.reshape(B, -1).astype(jnp.float32)
    tmask2d = ext_u_tmasks.reshape(B, -1).astype(jnp.float32)
    v = 0.0
    for i in range(L):
        v = v + _ref_pool(vfeats_arr[i], vmask2d, v_params["w1"][i], v_params["b1"][i],
                          v_params["w2"][i], v_params["b2"][i], v_params["we"][i],
                          v_params["be"][i])
    v = v / math.sqrt(L)
    v = v / jnp.maximum(jnp.linalg.norm(v, axis=1, keepdims=True), 1e-12)
    u = _ref_pool(u_tfeats, tmask2d, t_params["w1"], t_params["b1"], t_params["w2"],
                  t_params["b2"][0], t_params["we"], t_params["be"])
    u = u / jnp.maximum(jnp.linalg.norm(u, axis=1, keepdims=True), 1e-12)
    sim = jnp.einsum("bo,co->bc", u, v, precision=_HP)
    return sim, v, u


# ----------------------------------------------------------------------------
def _init_pooler(key, H, O):
    ks = jax.random.split(key, 6)
    s = 0.02
    return dict(
        w1=s * jax.random.normal(ks[0], (H, H), jnp.float32),
        b1=s * jax.random.normal(ks[1], (1, H), jnp.float32),
        w2=s * jax.random.normal(ks[2], (1, H), jnp.float32),
        b2=s * jax.random.normal(ks[3], (1,), jnp.float32),
        we=s * jax.random.normal(ks[4], (H, O), jnp.float32),
        be=s * jax.random.normal(ks[5], (1, O), jnp.float32),
    )


def _to_kernel_dtypes(p):
    q = dict(p)
    q["w1"] = p["w1"].astype(jnp.bfloat16)   # bf16 MXU path for the big matmuls
    q["we"] = p["we"].astype(jnp.bfloat16)
    return q


if __name__ == "__main__":
    B, S_T, S_V, H, O, L = 4, 8, 16, 32, 32, 3   # v_num_hidden_layers = 3

    key = jax.random.PRNGKey(0)
    k_u, k_v, k_mt, k_mv, k_tp, k_vp = jax.random.split(key, 6)

    # bf16 activations (halves DMA bytes); reference sees the same bf16 values.
    u_tfeats = jax.random.normal(k_u, (B, S_T, H), jnp.float32).astype(jnp.bfloat16)
    vfeats_arr = jax.random.normal(k_v, (L, B, S_V, H), jnp.float32).astype(jnp.bfloat16)

    tmask_bin = jax.random.bernoulli(k_mt, 0.8, (B, S_T)).astype(jnp.float32)
    tmask_bin = tmask_bin.at[:, 0].set(1.0)
    vmask_bin = jax.random.bernoulli(k_mv, 0.8, (B, S_V)).astype(jnp.float32)
    vmask_bin = vmask_bin.at[:, 0].set(1.0)
    ext_u_tmasks = ((1.0 - tmask_bin) * -10000.0).reshape(B, 1, 1, S_T)
    ext_vmasks = ((1.0 - vmask_bin) * -10000.0).reshape(B, 1, 1, S_V)

    # deterministic synthetic parameters
    t_params = _to_kernel_dtypes(_init_pooler(k_tp, H, O))
    v_list = [_init_pooler(k, H, O) for k in jax.random.split(k_vp, L)]
    v_params = {k: jnp.stack([p[k] for p in v_list], axis=0) for k in v_list[0]}
    v_params["b2"] = v_params["b2"][:, 0]            # (L, 1) -> (L,) SMEM scalars
    v_params = _to_kernel_dtypes(v_params)

    # training path: similarity matrix
    out = multimodal_similarity_forward(u_tfeats, ext_u_tmasks, vfeats_arr,
                                        ext_vmasks, t_params, v_params,
                                        training=True)
    sim = jax.block_until_ready(out["output"])

    # eval path: [v_norm, u_norm]
    out_eval = multimodal_similarity_forward(u_tfeats, ext_u_tmasks, vfeats_arr,
                                             ext_vmasks, t_params, v_params,
                                             training=False)
    v_norm, u_norm = out_eval["output"]
    jax.block_until_ready(v_norm)

    ref_sim, ref_v, ref_u = _ref_forward(u_tfeats, ext_u_tmasks, vfeats_arr,
                                         ext_vmasks, t_params, v_params)

    assert sim.shape == (B, B)
    # Tolerance covers bf16 operands on every MXU/VPU contraction (f32 accumulation)
    # plus the approximate EUP reciprocal in the softmax.
    tol = 2e-2
    assert float(jnp.max(jnp.abs(sim - ref_sim))) < tol, (sim, ref_sim)
    assert float(jnp.max(jnp.abs(v_norm - ref_v))) < tol
    assert float(jnp.max(jnp.abs(u_norm - ref_u))) < tol
    print("KERNEL_OK")
</pallas_src>

<mosaic_0001>
module attributes {stable_mosaic.version = 11 : i64} {
  func.func @kernel(%arg0: i32, %arg1: i32, %arg2: memref<1x4x16x32xbf16, #tpu.memory_space<vmem>>, %arg3: memref<4x16xf32, #tpu.memory_space<vmem>>, %arg4: memref<1x32x32xbf16, #tpu.memory_space<vmem>>, %arg5: memref<1x1x32xf32, #tpu.memory_space<vmem>>, %arg6: memref<1x1x32xf32, #tpu.memory_space<vmem>>, %arg7: memref<3xf32, #tpu.memory_space<smem>>, %arg8: memref<1x32x32xbf16, #tpu.memory_space<vmem>>, %arg9: memref<1x1x32xf32, #tpu.memory_space<vmem>>, %arg10: memref<4x8x32xbf16, #tpu.memory_space<vmem>>, %arg11: memref<4x8xf32, #tpu.memory_space<vmem>>, %arg12: memref<32x32xbf16, #tpu.memory_space<vmem>>, %arg13: memref<1x32xf32, #tpu.memory_space<vmem>>, %arg14: memref<1x32xf32, #tpu.memory_space<vmem>>, %arg15: memref<1xf32, #tpu.memory_space<smem>>, %arg16: memref<32x32xbf16, #tpu.memory_space<vmem>>, %arg17: memref<1x32xf32, #tpu.memory_space<vmem>>, %arg18: memref<4x32xf32, #tpu.memory_space<vmem>>, %arg19: memref<4x32xf32, #tpu.memory_space<vmem>>) attributes {dimension_semantics = [#tpu.dimension_semantics<parallel>, #tpu.dimension_semantics<arbitrary>], iteration_bounds = array<i64: 1, 3>, scalar_prefetch = 0 : i64, scratch_operands = 0 : i64, tpu.core_type = #tpu.core_type<tc>, window_params = [{transform_indices = @transform_0, window_bounds = array<i64: 1, 4, 16, 32>}, {pipeline_mode = #tpu.pipeline_mode<synchronous>, transform_indices = @transform_1, window_bounds = array<i64: 4, 16>}, {transform_indices = @transform_2, window_bounds = array<i64: 1, 32, 32>}, {transform_indices = @transform_3, window_bounds = array<i64: 1, 1, 32>}, {transform_indices = @transform_4, window_bounds = array<i64: 1, 1, 32>}, {transform_indices = @transform_5, window_bounds = array<i64: 3>}, {transform_indices = @transform_6, window_bounds = array<i64: 1, 32, 32>}, {transform_indices = @transform_7, window_bounds = array<i64: 1, 1, 32>}, {pipeline_mode = #tpu.pipeline_mode<synchronous>, transform_indices = @transform_8, window_bounds = array<i64: 4, 8, 32>}, {pipeline_mode = #tpu.pipeline_mode<synchronous>, transform_indices = @transform_9, window_bounds = array<i64: 4, 8>}, {pipeline_mode = #tpu.pipeline_mode<synchronous>, transform_indices = @transform_10, window_bounds = array<i64: 32, 32>}, {pipeline_mode = #tpu.pipeline_mode<synchronous>, transform_indices = @transform_11, window_bounds = array<i64: 1, 32>}, {pipeline_mode = #tpu.pipeline_mode<synchronous>, transform_indices = @transform_12, window_bounds = array<i64: 1, 32>}, {transform_indices = @transform_13, window_bounds = array<i64: 1>}, {pipeline_mode = #tpu.pipeline_mode<synchronous>, transform_indices = @transform_14, window_bounds = array<i64: 32, 32>}, {pipeline_mode = #tpu.pipeline_mode<synchronous>, transform_indices = @transform_15, window_bounds = array<i64: 1, 32>}, {transform_indices = @transform_16, window_bounds = array<i64: 4, 32>}, {transform_indices = @transform_17, window_bounds = array<i64: 4, 32>}]} {
    %c0 = arith.constant 0 : index
    %c0_0 = arith.constant 0 : index
    %c0_1 = arith.constant 0 : index
    %c0_2 = arith.constant 0 : index
    %0 = vector.load %arg2[%c0, %c0_0, %c0_1, %c0_2] : memref<1x4x16x32xbf16, #tpu.memory_space<vmem>>, vector<1x4x16x32xbf16>
    %1 = vector.shape_cast %0 : vector<1x4x16x32xbf16> to vector<4x16x32xbf16>
    %c0_3 = arith.constant 0 : index
    %c0_4 = arith.constant 0 : index
    %2 = vector.load %arg3[%c0_3, %c0_4] : memref<4x16xf32, #tpu.memory_space<vmem>>, vector<4x16xf32>
    %c0_5 = arith.constant 0 : index
    %c0_6 = arith.constant 0 : index
    %c0_7 = arith.constant 0 : index
    %3 = vector.load %arg4[%c0_5, %c0_6, %c0_7] : memref<1x32x32xbf16, #tpu.memory_space<vmem>>, vector<1x32x32xbf16>
    %4 = vector.shape_cast %3 : vector<1x32x32xbf16> to vector<32x32xbf16>
    %c0_8 = arith.constant 0 : index
    %c0_9 = arith.constant 0 : index
    %c0_10 = arith.constant 0 : index
    %5 = vector.load %arg5[%c0_8, %c0_9, %c0_10] : memref<1x1x32xf32, #tpu.memory_space<vmem>>, vector<1x1x32xf32>
    %6 = vector.shape_cast %5 : vector<1x1x32xf32> to vector<1x32xf32>
    %c0_11 = arith.constant 0 : index
    %c0_12 = arith.constant 0 : index
    %c0_13 = arith.constant 0 : index
    %7 = vector.load %arg6[%c0_11, %c0_12, %c0_13] : memref<1x1x32xf32, #tpu.memory_space<vmem>>, vector<1x1x32xf32>
    %8 = vector.shape_cast %7 : vector<1x1x32xf32> to vector<1x32xf32>
    %9 = arith.index_cast %arg1 : i32 to index
    %10 = memref.load %arg7[%9] : memref<3xf32, #tpu.memory_space<smem>>
    %c0_14 = arith.constant 0 : index
    %c0_15 = arith.constant 0 : index
    %c0_16 = arith.constant 0 : index
    %11 = vector.load %arg8[%c0_14, %c0_15, %c0_16] : memref<1x32x32xbf16, #tpu.memory_space<vmem>>, vector<1x32x32xbf16>
    %12 = vector.shape_cast %11 : vector<1x32x32xbf16> to vector<32x32xbf16>
    %c0_17 = arith.constant 0 : index
    %c0_18 = arith.constant 0 : index
    %c0_19 = arith.constant 0 : index
    %13 = vector.load %arg9[%c0_17, %c0_18, %c0_19] : memref<1x1x32xf32, #tpu.memory_space<vmem>>, vector<1x1x32xf32>
    %14 = vector.shape_cast %13 : vector<1x1x32xf32> to vector<1x32xf32>
    %15 = vector.shape_cast %1 : vector<4x16x32xbf16> to vector<64x32xbf16>
    %cst = arith.constant dense<0.000000e+00> : vector<64x32xf32>
    %16 = tpu.matmul %15, %4, %cst {dimension_numbers = #tpu.dot_dimension_numbers<[1], [0], [0], [1], [0, 0, 1, 1], [], []>} : vector<64x32xbf16>, vector<32x32xbf16>, vector<64x32xf32> -> vector<64x32xf32>
    %17 = vector.broadcast %6 : vector<1x32xf32> to vector<64x32xf32>
    %18 = arith.addf %16, %17 : vector<64x32xf32>
    %cst_20 = arith.constant 0.000000e+00 : f32
    %19 = vector.broadcast %cst_20 : f32 to vector<64x32xf32>
    %20 = arith.maximumf %18, %19 : vector<64x32xf32>
    %21 = vector.broadcast %8 : vector<1x32xf32> to vector<64x32xf32>
    %22 = arith.mulf %20, %21 : vector<64x32xf32>
    %23 = vector.shape_cast %22 : vector<64x32xf32> to vector<4x16x32xf32>
    %cst_21 = arith.constant dense<0.000000e+00> : vector<4x16xf32>
    %24 = vector.multi_reduction <add>, %23, %cst_21 [2] : vector<4x16x32xf32> to vector<4x16xf32>
    %25 = vector.broadcast %10 : f32 to vector<4x16xf32>
    %26 = arith.addf %24, %25 : vector<4x16xf32>
    %27 = arith.addf %26, %2 : vector<4x16xf32>
    %cst_22 = arith.constant dense<0xFF800000> : vector<4xf32>
    %28 = vector.multi_reduction <maximumf>, %27, %cst_22 [1] : vector<4x16xf32> to vector<4xf32>
    %29 = vector.shape_cast %28 : vector<4xf32> to vector<4x1xf32>
    %30 = vector.broadcast %29 : vector<4x1xf32> to vector<4x16xf32>
    %31 = arith.subf %27, %30 : vector<4x16xf32>
    %32 = math.exp %31 : vector<4x16xf32>
    %cst_23 = arith.constant dense<0.000000e+00> : vector<4xf32>
    %33 = vector.multi_reduction <add>, %32, %cst_23 [1] : vector<4x16xf32> to vector<4xf32>
    %34 = vector.shape_cast %33 : vector<4xf32> to vector<4x1xf32>
    %35 = tpu.reciprocal %34 {approx = true} : vector<4x1xf32> -> vector<4x1xf32>
    %36 = vector.broadcast %35 : vector<4x1xf32> to vector<4x16xf32>
    %37 = arith.mulf %32, %36 : vector<4x16xf32>
    %38 = arith.truncf %37 : vector<4x16xf32> to vector<4x16xbf16>
    %39 = vector.shape_cast %38 : vector<4x16xbf16> to vector<4x16x1xbf16>
    %40 = vector.broadcast %39 : vector<4x16x1xbf16> to vector<4x16x32xbf16>
    %41 = arith.mulf %40, %1 : vector<4x16x32xbf16>
    %42 = arith.extf %41 : vector<4x16x32xbf16> to vector<4x16x32xf32>
    %cst_24 = arith.constant dense<0.000000e+00> : vector<4x32xf32>
    %43 = vector.multi_reduction <add>, %42, %cst_24 [1] : vector<4x16x32xf32> to vector<4x32xf32>
    %44 = arith.truncf %43 : vector<4x32xf32> to vector<4x32xbf16>
    %cst_25 = arith.constant dense<0.000000e+00> : vector<4x32xf32>
    %45 = tpu.matmul %44, %12, %cst_25 {dimension_numbers = #tpu.dot_dimension_numbers<[1], [0], [0], [1], [0, 0, 1, 1], [], []>} : vector<4x32xbf16>, vector<32x32xbf16>, vector<4x32xf32> -> vector<4x32xf32>
    %46 = vector.broadcast %14 : vector<1x32xf32> to vector<4x32xf32>
    %47 = arith.addf %45, %46 : vector<4x32xf32>
    %c0_i32 = arith.constant 0 : i32
    %48 = arith.cmpi eq, %arg1, %c0_i32 : i32
    %49 = arith.extui %48 : i1 to i32
    %c0_i32_26 = arith.constant 0 : i32
    %50 = arith.cmpi ne, %49, %c0_i32_26 : i32
    scf.if %50 {
      %c0_30 = arith.constant 0 : index
      %c0_31 = arith.constant 0 : index
      %57 = vector.load %arg18[%c0_30, %c0_31] : memref<4x32xf32, #tpu.memory_space<vmem>>, vector<4x32xf32>
      tpu.vector_store %arg18[%c0_30, %c0_31], %47 {strides = array<i32>} : memref<4x32xf32, #tpu.memory_space<vmem>>, vector<4x32xf32>,
      %c0_32 = arith.constant 0 : index
      %c0_33 = arith.constant 0 : index
      %c0_34 = arith.constant 0 : index
      %58 = vector.load %arg10[%c0_32, %c0_33, %c0_34] : memref<4x8x32xbf16, #tpu.memory_space<vmem>>, vector<4x8x32xbf16>
      %c0_35 = arith.constant 0 : index
      %c0_36 = arith.constant 0 : index
      %59 = vector.load %arg11[%c0_35, %c0_36] : memref<4x8xf32, #tpu.memory_space<vmem>>, vector<4x8xf32>
      %c0_37 = arith.constant 0 : index
      %c0_38 = arith.constant 0 : index
      %60 = vector.load %arg12[%c0_37, %c0_38] : memref<32x32xbf16, #tpu.memory_space<vmem>>, vector<32x32xbf16>
      %c0_39 = arith.constant 0 : index
      %c0_40 = arith.constant 0 : index
      %61 = vector.load %arg13[%c0_39, %c0_40] : memref<1x32xf32, #tpu.memory_space<vmem>>, vector<1x32xf32>
      %c0_41 = arith.constant 0 : index
      %c0_42 = arith.constant 0 : index
      %62 = vector.load %arg14[%c0_41, %c0_42] : memref<1x32xf32, #tpu.memory_space<vmem>>, vector<1x32xf32>
      %c0_43 = arith.constant 0 : index
      %63 = memref.load %arg15[%c0_43] : memref<1xf32, #tpu.memory_space<smem>>
      %c0_44 = arith.constant 0 : index
      %c0_45 = arith.constant 0 : index
      %64 = vector.load %arg16[%c0_44, %c0_45] : memref<32x32xbf16, #tpu.memory_space<vmem>>, vector<32x32xbf16>
      %c0_46 = arith.constant 0 : index
      %c0_47 = arith.constant 0 : index
      %65 = vector.load %arg17[%c0_46, %c0_47] : memref<1x32xf32, #tpu.memory_space<vmem>>, vector<1x32xf32>
      %66 = vector.shape_cast %58 : vector<4x8x32xbf16> to vector<32x32xbf16>
      %cst_48 = arith.constant dense<0.000000e+00> : vector<32x32xf32>
      %67 = tpu.matmul %66, %60, %cst_48 {dimension_numbers = #tpu.dot_dimension_numbers<[1], [0], [0], [1], [0, 0, 1, 1], [], []>} : vector<32x32xbf16>, vector<32x32xbf16>, vector<32x32xf32> -> vector<32x32xf32>
      %68 = vector.broadcast %61 : vector<1x32xf32> to vector<32x32xf32>
      %69 = arith.addf %67, %68 : vector<32x32xf32>
      %cst_49 = arith.constant 0.000000e+00 : f32
      %70 = vector.broadcast %cst_49 : f32 to vector<32x32xf32>
      %71 = arith.maximumf %69, %70 : vector<32x32xf32>
      %72 = vector.broadcast %62 : vector<1x32xf32> to vector<32x32xf32>
      %73 = arith.mulf %71, %72 : vector<32x32xf32>
      %74 = vector.shape_cast %73 : vector<32x32xf32> to vector<4x8x32xf32>
      %cst_50 = arith.constant dense<0.000000e+00> : vector<4x8xf32>
      %75 = vector.multi_reduction <add>, %74, %cst_50 [2] : vector<4x8x32xf32> to vector<4x8xf32>
      %76 = vector.broadcast %63 : f32 to vector<4x8xf32>
      %77 = arith.addf %75, %76 : vector<4x8xf32>
      %78 = arith.addf %77, %59 : vector<4x8xf32>
      %cst_51 = arith.constant dense<0xFF800000> : vector<4xf32>
      %79 = vector.multi_reduction <maximumf>, %78, %cst_51 [1] : vector<4x8xf32> to vector<4xf32>
      %80 = vector.shape_cast %79 : vector<4xf32> to vector<4x1xf32>
      %81 = vector.broadcast %80 : vector<4x1xf32> to vector<4x8xf32>
      %82 = arith.subf %78, %81 : vector<4x8xf32>
      %83 = math.exp %82 : vector<4x8xf32>
      %cst_52 = arith.constant dense<0.000000e+00> : vector<4xf32>
      %84 = vector.multi_reduction <add>, %83, %cst_52 [1] : vector<4x8xf32> to vector<4xf32>
      %85 = vector.shape_cast %84 : vector<4xf32> to vector<4x1xf32>
      %86 = tpu.reciprocal %85 {approx = true} : vector<4x1xf32> -> vector<4x1xf32>
      %87 = vector.broadcast %86 : vector<4x1xf32> to vector<4x8xf32>
      %88 = arith.mulf %83, %87 : vector<4x8xf32>
      %89 = arith.truncf %88 : vector<4x8xf32> to vector<4x8xbf16>
      %90 = vector.shape_cast %89 : vector<4x8xbf16> to vector<4x8x1xbf16>
      %91 = vector.broadcast %90 : vector<4x8x1xbf16> to vector<4x8x32xbf16>
      %92 = arith.mulf %91, %58 : vector<4x8x32xbf16>
      %93 = arith.extf %92 : vector<4x8x32xbf16> to vector<4x8x32xf32>
      %cst_53 = arith.constant dense<0.000000e+00> : vector<4x32xf32>
      %94 = vector.multi_reduction <add>, %93, %cst_53 [1] : vector<4x8x32xf32> to vector<4x32xf32>
      %95 = arith.truncf %94 : vector<4x32xf32> to vector<4x32xbf16>
      %cst_54 = arith.constant dense<0.000000e+00> : vector<4x32xf32>
      %96 = tpu.matmul %95, %64, %cst_54 {dimension_numbers = #tpu.dot_dimension_numbers<[1], [0], [0], [1], [0, 0, 1, 1], [], []>} : vector<4x32xbf16>, vector<32x32xbf16>, vector<4x32xf32> -> vector<4x32xf32>
      %97 = vector.broadcast %65 : vector<1x32xf32> to vector<4x32xf32>
      %98 = arith.addf %96, %97 : vector<4x32xf32>
      %99 = arith.mulf %98, %98 : vector<4x32xf32>
      %cst_55 = arith.constant dense<0.000000e+00> : vector<4xf32>
      %100 = vector.multi_reduction <add>, %99, %cst_55 [1] : vector<4x32xf32> to vector<4xf32>
      %101 = vector.shape_cast %100 : vector<4xf32> to vector<4x1xf32>
      %cst_56 = arith.constant 1.000000e-24 : f32
      %102 = vector.broadcast %cst_56 : f32 to vector<4x1xf32>
      %103 = arith.maximumf %101, %102 : vector<4x1xf32>
      %104 = math.rsqrt %103 : vector<4x1xf32>
      %105 = vector.broadcast %104 : vector<4x1xf32> to vector<4x32xf32>
      %106 = arith.mulf %98, %105 : vector<4x32xf32>
      %c0_57 = arith.constant 0 : index
      %c0_58 = arith.constant 0 : index
      %107 = vector.load %arg19[%c0_57, %c0_58] : memref<4x32xf32, #tpu.memory_space<vmem>>, vector<4x32xf32>
      tpu.vector_store %arg19[%c0_57, %c0_58], %106 {strides = array<i32>} : memref<4x32xf32, #tpu.memory_space<vmem>>, vector<4x32xf32>,
    } else {
    }
    %c0_i32_27 = arith.constant 0 : i32
    %51 = arith.cmpi sgt, %arg1, %c0_i32_27 : i32
    %52 = arith.extui %51 : i1 to i32
    %c0_i32_28 = arith.constant 0 : i32
    %53 = arith.cmpi ne, %52, %c0_i32_28 : i32
    scf.if %53 {
      %c0_30 = arith.constant 0 : index
      %c0_31 = arith.constant 0 : index
      %57 = vector.load %arg18[%c0_30, %c0_31] : memref<4x32xf32, #tpu.memory_space<vmem>>, vector<4x32xf32>
      %58 = arith.addf %57, %47 : vector<4x32xf32>
      %c0_32 = arith.constant 0 : index
      %c0_33 = arith.constant 0 : index
      %59 = vector.load %arg18[%c0_32, %c0_33] : memref<4x32xf32, #tpu.memory_space<vmem>>, vector<4x32xf32>
      tpu.vector_store %arg18[%c0_32, %c0_33], %58 {strides = array<i32>} : memref<4x32xf32, #tpu.memory_space<vmem>>, vector<4x32xf32>,
    } else {
    }
    %c2_i32 = arith.constant 2 : i32
    %54 = arith.cmpi eq, %arg1, %c2_i32 : i32
    %55 = arith.extui %54 : i1 to i32
    %c0_i32_29 = arith.constant 0 : i32
    %56 = arith.cmpi ne, %55, %c0_i32_29 : i32
    scf.if %56 {
      %c0_30 = arith.constant 0 : index
      %c0_31 = arith.constant 0 : index
      %57 = vector.load %arg18[%c0_30, %c0_31] : memref<4x32xf32, #tpu.memory_space<vmem>>, vector<4x32xf32>
      %cst_32 = arith.constant 0.577350259 : f32
      %58 = vector.broadcast %cst_32 : f32 to vector<4x32xf32>
      %59 = arith.mulf %57, %58 : vector<4x32xf32>
      %60 = arith.mulf %59, %59 : vector<4x32xf32>
      %cst_33 = arith.constant dense<0.000000e+00> : vector<4xf32>
      %61 = vector.multi_reduction <add>, %60, %cst_33 [1] : vector<4x32xf32> to vector<4xf32>
      %62 = vector.shape_cast %61 : vector<4xf32> to vector<4x1xf32>
      %cst_34 = arith.constant 1.000000e-24 : f32
      %63 = vector.broadcast %cst_34 : f32 to vector<4x1xf32>
      %64 = arith.maximumf %62, %63 : vector<4x1xf32>
      %65 = math.rsqrt %64 : vector<4x1xf32>
      %66 = vector.broadcast %65 : vector<4x1xf32> to vector<4x32xf32>
      %67 = arith.mulf %59, %66 : vector<4x32xf32>
      %c0_35 = arith.constant 0 : index
      %c0_36 = arith.constant 0 : index
      %68 = vector.load %arg18[%c0_35, %c0_36] : memref<4x32xf32, #tpu.memory_space<vmem>>, vector<4x32xf32>
      tpu.vector_store %arg18[%c0_35, %c0_36], %67 {strides = array<i32>} : memref<4x32xf32, #tpu.memory_space<vmem>>, vector<4x32xf32>,
    } else {
    }
    return
  }
  func.func @transform_0(%arg0: i32, %arg1: i32) -> (i32, i32, i32, i32) {
    %c0_i32 = arith.constant 0 : i32
    %c0_i32_0 = arith.constant 0 : i32
    %c0_i32_1 = arith.constant 0 : i32
    return %arg1, %arg0, %c0_i32, %c0_i32_0 : i32, i32, i32, i32
  }
  func.func @transform_1(%arg0: i32, %arg1: i32) -> (i32, i32) {
    %c0_i32 = arith.constant 0 : i32
    %c0_i32_0 = arith.constant 0 : i32
    return %arg0, %c0_i32 : i32, i32
  }
  func.func @transform_2(%arg0: i32, %arg1: i32) -> (i32, i32, i32) {
    %c0_i32 = arith.constant 0 : i32
    %c0_i32_0 = arith.constant 0 : i32
    %c0_i32_1 = arith.constant 0 : i32
    return %arg1, %c0_i32, %c0_i32_0 : i32, i32, i32
  }
  func.func @transform_3(%arg0: i32, %arg1: i32) -> (i32, i32, i32) {
    %c0_i32 = arith.constant 0 : i32
    %c0_i32_0 = arith.constant 0 : i32
    %c0_i32_1 = arith.constant 0 : i32
    return %arg1, %c0_i32, %c0_i32_0 : i32, i32, i32
  }
  func.func @transform_4(%arg0: i32, %arg1: i32) -> (i32, i32, i32) {
    %c0_i32 = arith.constant 0 : i32
    %c0_i32_0 = arith.constant 0 : i32
    %c0_i32_1 = arith.constant 0 : i32
    return %arg1, %c0_i32, %c0_i32_0 : i32, i32, i32
  }
  func.func @transform_5(%arg0: i32, %arg1: i32) -> i32 {
    %c0_i32 = arith.constant 0 : i32
    %c0_i32_0 = arith.constant 0 : i32
    return %c0_i32 : i32
  }
  func.func @transform_6(%arg0: i32, %arg1: i32) -> (i32, i32, i32) {
    %c0_i32 = arith.constant 0 : i32
    %c0_i32_0 = arith.constant 0 : i32
    %c0_i32_1 = arith.constant 0 : i32
    return %arg1, %c0_i32, %c0_i32_0 : i32, i32, i32
  }
  func.func @transform_7(%arg0: i32, %arg1: i32) -> (i32, i32, i32) {
    %c0_i32 = arith.constant 0 : i32
    %c0_i32_0 = arith.constant 0 : i32
    %c0_i32_1 = arith.constant 0 : i32
    return %arg1, %c0_i32, %c0_i32_0 : i32, i32, i32
  }
  func.func @transform_8(%arg0: i32, %arg1: i32) -> (i32, i32, i32) {
    %c0_i32 = arith.constant 0 : i32
    %c0_i32_0 = arith.constant 0 : i32
    %c0_i32_1 = arith.constant 0 : i32
    return %arg0, %c0_i32, %c0_i32_0 : i32, i32, i32
  }
  func.func @transform_9(%arg0: i32, %arg1: i32) -> (i32, i32) {
    %c0_i32 = arith.constant 0 : i32
    %c0_i32_0 = arith.constant 0 : i32
    return %arg0, %c0_i32 : i32, i32
  }
  func.func @transform_10(%arg0: i32, %arg1: i32) -> (i32, i32) {
    %c0_i32 = arith.constant 0 : i32
    %c0_i32_0 = arith.constant 0 : i32
    %c0_i32_1 = arith.constant 0 : i32
    return %c0_i32, %c0_i32_0 : i32, i32
  }
  func.func @transform_11(%arg0: i32, %arg1: i32) -> (i32, i32) {
    %c0_i32 = arith.constant 0 : i32
    %c0_i32_0 = arith.constant 0 : i32
    %c0_i32_1 = arith.constant 0 : i32
    return %c0_i32, %c0_i32_0 : i32, i32
  }
  func.func @transform_12(%arg0: i32, %arg1: i32) -> (i32, i32) {
    %c0_i32 = arith.constant 0 : i32
    %c0_i32_0 = arith.constant 0 : i32
    %c0_i32_1 = arith.constant 0 : i32
    return %c0_i32, %c0_i32_0 : i32, i32
  }
  func.func @transform_13(%arg0: i32, %arg1: i32) -> i32 {
    %c0_i32 = arith.constant 0 : i32
    %c0_i32_0 = arith.constant 0 : i32
    return %c0_i32 : i32
  }
  func.func @transform_14(%arg0: i32, %arg1: i32) -> (i32, i32) {
    %c0_i32 = arith.constant 0 : i32
    %c0_i32_0 = arith.constant 0 : i32
    %c0_i32_1 = arith.constant 0 : i32
    return %c0_i32, %c0_i32_0 : i32, i32
  }
  func.func @transform_15(%arg0: i32, %arg1: i32) -> (i32, i32) {
    %c0_i32 = arith.constant 0 : i32
    %c0_i32_0 = arith.constant 0 : i32
    %c0_i32_1 = arith.constant 0 : i32
    return %c0_i32, %c0_i32_0 : i32, i32
  }
  func.func @transform_16(%arg0: i32, %arg1: i32) -> (i32, i32) {
    %c0_i32 = arith.constant 0 : i32
    %c0_i32_0 = arith.constant 0 : i32
    return %arg0, %c0_i32 : i32, i32
  }
  func.func @transform_17(%arg0: i32, %arg1: i32) -> (i32, i32) {
    %c0_i32 = arith.constant 0 : i32
    %c0_i32_0 = arith.constant 0 : i32
    return %arg0, %c0_i32 : i32, i32
  }
}

</mosaic_0001>

<llo_original>
// kernel: tpu_custom_call.1
$region0: #{tpu_custom_call.1}
  #allocation0 [shape = 'u32[]', space=smem, size = 0x4, offset = 0x4, fixed_abs, tag = 'smem constant byte address 0x4 - core index']
  #allocation1 [shape = 'u32[144,128]{1,0:T(1,128)}', space=vmem, size = 0x12000, scoped, tag = 'internal scratch']
  #allocation2 [shape = 'f32[1]{0:T(128)S(6)}', space=smem, size = 0x200, scoped, tag = 'scoped memory for tpu_custom_call.1']
  %s0 = inlined_call_operand.hbm [shape: bf16[3,4,16,32], index: 0, kind: input, shape index: {}]
  %s1 = inlined_call_operand.hbm [shape: f32[4,16], index: 1, kind: input, shape index: {}]
  %s2 = inlined_call_operand.hbm [shape: bf16[3,32,32], index: 2, kind: input, shape index: {}]
  %s3 = inlined_call_operand.hbm [shape: f32[3,1,32], index: 3, kind: input, shape index: {}]
  %s4 = inlined_call_operand.hbm [shape: f32[3,1,32], index: 4, kind: input, shape index: {}]
  %s5 = inlined_call_operand.vmem [shape: f32[3], index: 5, kind: input, shape index: {}]
  %s6 = inlined_call_operand.hbm [shape: bf16[3,32,32], index: 6, kind: input, shape index: {}]
  %s7 = inlined_call_operand.hbm [shape: f32[3,1,32], index: 7, kind: input, shape index: {}]
  %s8 = inlined_call_operand.vmem [shape: bf16[4,8,32], index: 8, kind: input, shape index: {}]
  %s9 = inlined_call_operand.hbm [shape: f32[4,8], index: 9, kind: input, shape index: {}]
  %s10 = inlined_call_operand.vmem [shape: bf16[32,32], index: 10, kind: input, shape index: {}]
  %s11 = inlined_call_operand.hbm [shape: f32[1,32], index: 11, kind: input, shape index: {}]
  %s12 = inlined_call_operand.hbm [shape: f32[1,32], index: 12, kind: input, shape index: {}]
  %s13 = inlined_call_operand.<no memory space> [shape: f32[1], index: 13, kind: input, shape index: {}]
  %s14 = inlined_call_operand.vmem [shape: bf16[32,32], index: 14, kind: input, shape index: {}]
  %s15 = inlined_call_operand.vmem [shape: f32[1,32], index: 15, kind: input, shape index: {}]
  %s16 = inlined_call_operand.hbm [shape: f32[4,32], index: 16, kind: output, shape index: {0}]
  %s17 = inlined_call_operand.hbm [shape: f32[4,32], index: 17, kind: output, shape index: {1}]
  %18 = xla_tuple %s16, %s17
  %s19 = sld [smem:[#allocation0]]
  $region161: #{tpu_custom_call.1} parent=0
    _
  %s21 = ssub.s32 1, %s19
  %s22 = scalar_select 0, %s21, %s19
  %23 = sst [smem:[#allocation2]] %s13
  $region1: #{tpu_custom_call.1} parent=0
    #allocation3 [shape = 'u8[32768]{0}', space=vmem, size = 0x8000, scoped, tag = 'input window, operand 0']
    #allocation4 [shape = 's32[2]{0}', space=sflag, size = 0x8, scoped, tag = 'scoped memory for tpu_custom_call.1']
    #allocation5 [shape = 's32[2]{0}', space=sflag, size = 0x8, scoped, tag = 'scoped memory for tpu_custom_call.1']
    #allocation6 [shape = 's32[2]{0}', space=sflag, size = 0x8, scoped, tag = 'scoped memory for tpu_custom_call.1']
    #allocation7 [shape = 'u8[2048]{0}', space=vmem, size = 0x800, scoped, tag = 'input window, operand 1, single buffered']
    #allocation8 [shape = 's32[1]{0}', space=sflag, size = 0x4, scoped, tag = 'scoped memory for tpu_custom_call.1']
    #allocation9 [shape = 'u8[16384]{0}', space=vmem, size = 0x4000, scoped, tag = 'input window, operand 2']
    #allocation10 [shape = 'u8[1024]{0}', space=vmem, size = 0x400, scoped, tag = 'input window, operand 3']
    #allocation11 [shape = 'u8[1024]{0}', space=vmem, size = 0x400, scoped, tag = 'input window, operand 4']
    #allocation12 [shape = 'u8[512]{0}', space=smem, size = 0x200, scoped, tag = 'input window, operand 5, single buffered']
    #allocation13 [shape = 'u8[16384]{0}', space=vmem, size = 0x4000, scoped, tag = 'input window, operand 6']
    #allocation14 [shape = 'u8[1024]{0}', space=vmem, size = 0x400, scoped, tag = 'input window, operand 7']
    #allocation15 [shape = 'u8[2048]{0}', space=vmem, size = 0x800, scoped, tag = 'input window, operand 9, single buffered']
    #allocation16 [shape = 'u8[512]{0}', space=vmem, size = 0x400, scoped, tag = 'input window, operand 11, single buffered']
    #allocation17 [shape = 's32[1]{0}', space=sflag, size = 0x4, scoped, tag = 'scoped memory for tpu_custom_call.1']
    #allocation18 [shape = 'u8[512]{0}', space=vmem, size = 0x400, scoped, tag = 'input window, operand 12, single buffered']
    #allocation19 [shape = 'u8[2048]{0}', space=vmem, size = 0x800, scoped, tag = 'output window, operand 0, single buffered']
    #allocation20 [shape = 'u8[2048]{0}', space=vmem, size = 0x800, scoped, tag = 'output window, operand 1, single buffered']
    #allocation21 [shape = 's32[1]{0}', space=sflag, size = 0x4, scoped, tag = 'scoped memory for tpu_custom_call.1']
    %24 = vsyncpa [#allocation4], 0
    %s25 = scalar_lea.sflag [#allocation4], 1
    %26 = vsyncpa %s25, 0
    %27 = vsyncpa [#allocation8], 0
    %28 = vsyncpa [#allocation6], 0
    %29 = vsyncpa [#allocation17], 0
    %30 = vsyncpa [#allocation5], 0
    %31 = vsyncpa [#allocation21], 0
    loop: start=0, step=1, limit=5
    $region2: #{tpu_custom_call.1} parent=1 // loop_pre_header
      _
    $region3: #{tpu_custom_call.1} parent=1 // loop_header
      %s33 = sphi 0, %s37
      %p34 = scmp.ge.s32.totalorder %s33, 5
      %s40 = sphi 0, %s52
      %s41 = sphi 0, %s48
      %s42 = sphi 0, %s40
      %s43 = sphi 0, %s41
      %s44 = sphi 0, %s42
      %s45 = sphi 0, %s43
      %s57 = sphi 0, %s59
      %s60 = sphi 0, %s57
      %s61 = sphi 0, %s60
      %s77 = sphi 0, %s61
      %s83 = sphi 0, %s85
      %s86 = sphi 0, %s83
      %s87 = sphi 0, %s86
      %s103 = sphi 0, %s87
      %s109 = sphi 0, %s111
      %s112 = sphi 0, %s109
      %s113 = sphi 0, %s112
      %s129 = sphi 0, %s113
      %s135 = sphi 0, %s137
      %s138 = sphi 0, %s135
      %s139 = sphi 0, %s138
      %s155 = sphi 0, %s139
      %s161 = sphi 0, %s163
      %s164 = sphi 0, %s161
      %s165 = sphi 0, %s164
      %s181 = sphi 0, %s165
      %s185 = sphi 0, %s185
      %s187 = sphi 0, %s185
      %s188 = sphi 0, %s187
      %s202 = sphi 0, %s188
      %s208 = sphi 0, %s210
      %s211 = sphi 0, %s208
      %s212 = sphi 0, %s211
      %s228 = sphi 0, %s212
      %s234 = sphi 0, %s236
      %s237 = sphi 0, %s234
      %s238 = sphi 0, %s237
      %s254 = sphi 0, %s238
      %s260 = sphi 0, %s262
      %s263 = sphi 0, %s260
      %s264 = sphi 0, %s263
      %s280 = sphi 0, %s264
      %s286 = sphi 0, %s288
      %s289 = sphi 0, %s286
      %s290 = sphi 0, %s289
      %s306 = sphi 0, %s290
      %s310 = sphi 0, %s310
      %s312 = sphi 0, %s310
      %s313 = sphi 0, %s312
      %s327 = sphi 0, %s313
      %s331 = sphi 0, %s331
      %s333 = sphi 0, %s331
      %s334 = sphi 0, %s333
      %s348 = sphi 0, %s334
      %s352 = sphi 0, %s352
      %s354 = sphi 0, %s352
      %s355 = sphi 0, %s354
      %s369 = sphi 0, %s355
      %s373 = sphi 0, %s373
      %s375 = sphi 0, %s373
      %s376 = sphi 0, %s375
      %s390 = sphi 0, %s376
      %s394 = sphi 0, %s394
      %s396 = sphi 0, %s394
      %s397 = sphi 0, %s396
      %s411 = sphi 0, %s397
      %s415 = sphi 0, %s415
      %s417 = sphi 0, %s415
      %s418 = sphi 0, %s417
      %s432 = sphi 0, %s418
      %s438 = sphi 0, %s440
      %s441 = sphi 0, %s438
      %s442 = sphi 0, %s441
      %s458 = sphi 0, %s442
      %s464 = sphi 0, %s466
      %s467 = sphi 0, %s464
      %s468 = sphi 0, %s467
      %s484 = sphi 0, %s468
    $region4: #{tpu_custom_call.1} parent=1 // loop_header_branch
      %36 = sbr.rel (%p34) target = $region8
    $region5: #{tpu_custom_call.1} parent=1 // loop_body
      %s38 = ssub.s32 %s33, 1
      %s39 = ssub.s32 %s33, 2
      %s46 = sadd.s32 1, %s41
      %p47 = scmp.ge.s32.totalorder %s46, 3
      %s48 = scalar_select %p47, 0, %s46
      %s49 = sadd.s32 1, %s40
      %s50 = scalar_select %p47, %s49, %s40
      %p51 = scmp.ge.s32.totalorder %s50, 1
      %s52 = scalar_select %p51, 0, %s50
      %s53 = ssub.s32 %s41, %s48
      %s54 = ssub.s32 %s40, %s52
      %s55 = sor.u32 %s53, %s54
      %p56 = scmp.eq.s32.totalorder %s55, 0
      %s58 = sadd.s32 %s57, 1
      %s59 = scalar_select %p56, %s57, %s58
      %p62 = pneg %p56
      %p63 = scmp.eq.s32.totalorder %s33, 2
      %p64 = por %p62, %p63
      %p65 = scmp.ne.s32.totalorder %s57, %s60
      %p66 = scmp.eq.s32.totalorder %s33, 0
      %p67 = por %p65, %p66
      %p68 = scmp.ne.s32.totalorder %s57, %s60
      %p69 = scmp.eq.s32.totalorder %s38, 2
      %p70 = por %p68, %p69
      %p71 = scmp.ne.s32.totalorder %s60, %s61
      %p72 = scmp.eq.s32.totalorder %s38, 0
      %p73 = por %p71, %p72
      %p74 = scmp.ne.s32.totalorder %s60, %s61
      %p75 = scmp.eq.s32.totalorder %s39, 2
      %p76 = por %p74, %p75
      %p78 = scmp.ne.s32.totalorder %s61, %s77
      %p79 = scmp.eq.s32.totalorder %s39, 0
      %p80 = por %p78, %p79
      %s81 = ssub.s32 %s40, %s52
      %p82 = scmp.eq.s32.totalorder %s81, 0
      %s84 = sadd.s32 %s83, 1
      %s85 = scalar_select %p82, %s83, %s84
      %p88 = pneg %p82
      %p89 = scmp.eq.s32.totalorder %s33, 2
      %p90 = por %p88, %p89
      %p91 = scmp.ne.s32.totalorder %s83, %s86
      %p92 = scmp.eq.s32.totalorder %s33, 0
      %p93 = por %p91, %p92
      %p94 = scmp.ne.s32.totalorder %s83, %s86
      %p95 = scmp.eq.s32.totalorder %s38, 2
      %p96 = por %p94, %p95
      %p97 = scmp.ne.s32.totalorder %s86, %s87
      %p98 = scmp.eq.s32.totalorder %s38, 0
      %p99 = por %p97, %p98
      %p100 = scmp.ne.s32.totalorder %s86, %s87
      %p101 = scmp.eq.s32.totalorder %s39, 2
      %p102 = por %p100, %p101
      %p104 = scmp.ne.s32.totalorder %s87, %s103
      %p105 = scmp.eq.s32.totalorder %s39, 0
      %p106 = por %p104, %p105
      %s107 = ssub.s32 %s41, %s48
      %p108 = scmp.eq.s32.totalorder %s107, 0
      %s110 = sadd.s32 %s109, 1
      %s111 = scalar_select %p108, %s109, %s110
      %p114 = pneg %p108
      %p115 = scmp.eq.s32.totalorder %s33, 2
      %p116 = por %p114, %p115
      %p117 = scmp.ne.s32.totalorder %s109, %s112
      %p118 = scmp.eq.s32.totalorder %s33, 0
      %p119 = por %p117, %p118
      %p120 = scmp.ne.s32.totalorder %s109, %s112
      %p121 = scmp.eq.s32.totalorder %s38, 2
      %p122 = por %p120, %p121
      %p123 = scmp.ne.s32.totalorder %s112, %s113
      %p124 = scmp.eq.s32.totalorder %s38, 0
      %p125 = por %p123, %p124
      %p126 = scmp.ne.s32.totalorder %s112, %s113
      %p127 = scmp.eq.s32.totalorder %s39, 2
      %p128 = por %p126, %p127
      %p130 = scmp.ne.s32.totalorder %s113, %s129
      %p131 = scmp.eq.s32.totalorder %s39, 0
      %p132 = por %p130, %p131
      %s133 = ssub.s32 %s41, %s48
      %p134 = scmp.eq.s32.totalorder %s133, 0
      %s136 = sadd.s32 %s135, 1
      %s137 = scalar_select %p134, %s135, %s136
      %p140 = pneg %p134
      %p141 = scmp.eq.s32.totalorder %s33, 2
      %p142 = por %p140, %p141
      %p143 = scmp.ne.s32.totalorder %s135, %s138
      %p144 = scmp.eq.s32.totalorder %s33, 0
      %p145 = por %p143, %p144
      %p146 = scmp.ne.s32.totalorder %s135, %s138
      %p147 = scmp.eq.s32.totalorder %s38, 2
      %p148 = por %p146, %p147
      %p149 = scmp.ne.s32.totalorder %s138, %s139
      %p150 = scmp.eq.s32.totalorder %s38, 0
      %p151 = por %p149, %p150
      %p152 = scmp.ne.s32.totalorder %s138, %s139
      %p153 = scmp.eq.s32.totalorder %s39, 2
      %p154 = por %p152, %p153
      %p156 = scmp.ne.s32.totalorder %s139, %s155
      %p157 = scmp.eq.s32.totalorder %s39, 0
      %p158 = por %p156, %p157
      %s159 = ssub.s32 %s41, %s48
      %p160 = scmp.eq.s32.totalorder %s159, 0
      %s162 = sadd.s32 %s161, 1
      %s163 = scalar_select %p160, %s161, %s162
      %p166 = pneg %p160
      %p167 = scmp.eq.s32.totalorder %s33, 2
      %p168 = por %p166, %p167
      %p169 = scmp.ne.s32.totalorder %s161, %s164
      %p170 = scmp.eq.s32.totalorder %s33, 0
      %p171 = por %p169, %p170
      %p172 = scmp.ne.s32.totalorder %s161, %s164
      %p173 = scmp.eq.s32.totalorder %s38, 2
      %p174 = por %p172, %p173
      %p175 = scmp.ne.s32.totalorder %s164, %s165
      %p176 = scmp.eq.s32.totalorder %s38, 0
      %p177 = por %p175, %p176
      %p178 = scmp.ne.s32.totalorder %s164, %s165
      %p179 = scmp.eq.s32.totalorder %s39, 2
      %p180 = por %p178, %p179
      %p182 = scmp.ne.s32.totalorder %s165, %s181
      %p183 = scmp.eq.s32.totalorder %s39, 0
      %p184 = por %p182, %p183
      %s186 = sadd.s32 %s185, 1
      %p189 = scmp.eq.s32.totalorder %s33, 2
      %p190 = scmp.ne.s32.totalorder %s185, %s187
      %p191 = scmp.eq.s32.totalorder %s33, 0
      %p192 = por %p190, %p191
      %p193 = scmp.ne.s32.totalorder %s185, %s187
      %p194 = scmp.eq.s32.totalorder %s38, 2
      %p195 = por %p193, %p194
      %p196 = scmp.ne.s32.totalorder %s187, %s188
      %p197 = scmp.eq.s32.totalorder %s38, 0
      %p198 = por %p196, %p197
      %p199 = scmp.ne.s32.totalorder %s187, %s188
      %p200 = scmp.eq.s32.totalorder %s39, 2
      %p201 = por %p199, %p200
      %p203 = scmp.ne.s32.totalorder %s188, %s202
      %p204 = scmp.eq.s32.totalorder %s39, 0
      %p205 = por %p203, %p204
      %s206 = ssub.s32 %s41, %s48
      %p207 = scmp.eq.s32.totalorder %s206, 0
      %s209 = sadd.s32 %s208, 1
      %s210 = scalar_select %p207, %s208, %s209
      %p213 = pneg %p207
      %p214 = scmp.eq.s32.totalorder %s33, 2
      %p215 = por %p213, %p214
      %p216 = scmp.ne.s32.totalorder %s208, %s211
      %p217 = scmp.eq.s32.totalorder %s33, 0
      %p218 = por %p216, %p217
      %p219 = scmp.ne.s32.totalorder %s208, %s211
      %p220 = scmp.eq.s32.totalorder %s38, 2
      %p221 = por %p219, %p220
      %p222 = scmp.ne.s32.totalorder %s211, %s212
      %p223 = scmp.eq.s32.totalorder %s38, 0
      %p224 = por %p222, %p223
      %p225 = scmp.ne.s32.totalorder %s211, %s212
      %p226 = scmp.eq.s32.totalorder %s39, 2
      %p227 = por %p225, %p226
      %p229 = scmp.ne.s32.totalorder %s212, %s228
      %p230 = scmp.eq.s32.totalorder %s39, 0
      %p231 = por %p229, %p230
      %s232 = ssub.s32 %s41, %s48
      %p233 = scmp.eq.s32.totalorder %s232, 0
      %s235 = sadd.s32 %s234, 1
      %s236 = scalar_select %p233, %s234, %s235
      %p239 = pneg %p233
      %p240 = scmp.eq.s32.totalorder %s33, 2
      %p241 = por %p239, %p240
      %p242 = scmp.ne.s32.totalorder %s234, %s237
      %p243 = scmp.eq.s32.totalorder %s33, 0
      %p244 = por %p242, %p243
      %p245 = scmp.ne.s32.totalorder %s234, %s237
      %p246 = scmp.eq.s32.totalorder %s38, 2
      %p247 = por %p245, %p246
      %p248 = scmp.ne.s32.totalorder %s237, %s238
      %p249 = scmp.eq.s32.totalorder %s38, 0
      %p250 = por %p248, %p249
      %p251 = scmp.ne.s32.totalorder %s237, %s238
      %p252 = scmp.eq.s32.totalorder %s39, 2
      %p253 = por %p251, %p252
      %p255 = scmp.ne.s32.totalorder %s238, %s254
      %p256 = scmp.eq.s32.totalorder %s39, 0
      %p257 = por %p255, %p256
      %s258 = ssub.s32 %s40, %s52
      %p259 = scmp.eq.s32.totalorder %s258, 0
      %s261 = sadd.s32 %s260, 1
      %s262 = scalar_select %p259, %s260, %s261
      %p265 = pneg %p259
      %p266 = scmp.eq.s32.totalorder %s33, 2
      %p267 = por %p265, %p266
      %p268 = scmp.ne.s32.totalorder %s260, %s263
      %p269 = scmp.eq.s32.totalorder %s33, 0
      %p270 = por %p268, %p269
      %p271 = scmp.ne.s32.totalorder %s260, %s263
      %p272 = scmp.eq.s32.totalorder %s38, 2
      %p273 = por %p271, %p272
      %p274 = scmp.ne.s32.totalorder %s263, %s264
      %p275 = scmp.eq.s32.totalorder %s38, 0
      %p276 = por %p274, %p275
      %p277 = scmp.ne.s32.totalorder %s263, %s264
      %p278 = scmp.eq.s32.totalorder %s39, 2
      %p279 = por %p277, %p278
      %p281 = scmp.ne.s32.totalorder %s264, %s280
      %p282 = scmp.eq.s32.totalorder %s39, 0
      %p283 = por %p281, %p282
      %s284 = ssub.s32 %s40, %s52
      %p285 = scmp.eq.s32.totalorder %s284, 0
      %s287 = sadd.s32 %s286, 1
      %s288 = scalar_select %p285, %s286, %s287
      %p291 = pneg %p285
      %p292 = scmp.eq.s32.totalorder %s33, 2
      %p293 = por %p291, %p292
      %p294 = scmp.ne.s32.totalorder %s286, %s289
      %p295 = scmp.eq.s32.totalorder %s33, 0
      %p296 = por %p294, %p295
      %p297 = scmp.ne.s32.totalorder %s286, %s289
      %p298 = scmp.eq.s32.totalorder %s38, 2
      %p299 = por %p297, %p298
      %p300 = scmp.ne.s32.totalorder %s289, %s290
      %p301 = scmp.eq.s32.totalorder %s38, 0
      %p302 = por %p300, %p301
      %p303 = scmp.ne.s32.totalorder %s289, %s290
      %p304 = scmp.eq.s32.totalorder %s39, 2
      %p305 = por %p303, %p304
      %p307 = scmp.ne.s32.totalorder %s290, %s306
      %p308 = scmp.eq.s32.totalorder %s39, 0
      %p309 = por %p307, %p308
      %s311 = sadd.s32 %s310, 1
      %p314 = scmp.eq.s32.totalorder %s33, 2
      %p315 = scmp.ne.s32.totalorder %s310, %s312
      %p316 = scmp.eq.s32.totalorder %s33, 0
      %p317 = por %p315, %p316
      %p318 = scmp.ne.s32.totalorder %s310, %s312
      %p319 = scmp.eq.s32.totalorder %s38, 2
      %p320 = por %p318, %p319
      %p321 = scmp.ne.s32.totalorder %s312, %s313
      %p322 = scmp.eq.s32.totalorder %s38, 0
      %p323 = por %p321, %p322
      %p324 = scmp.ne.s32.totalorder %s312, %s313
      %p325 = scmp.eq.s32.totalorder %s39, 2
      %p326 = por %p324, %p325
      %p328 = scmp.ne.s32.totalorder %s313, %s327
      %p329 = scmp.eq.s32.totalorder %s39, 0
      %p330 = por %p328, %p329
      %s332 = sadd.s32 %s331, 1
      %p335 = scmp.eq.s32.totalorder %s33, 2
      %p336 = scmp.ne.s32.totalorder %s331, %s333
      %p337 = scmp.eq.s32.totalorder %s33, 0
      %p338 = por %p336, %p337
      %p339 = scmp.ne.s32.totalorder %s331, %s333
      %p340 = scmp.eq.s32.totalorder %s38, 2
      %p341 = por %p339, %p340
      %p342 = scmp.ne.s32.totalorder %s333, %s334
      %p343 = scmp.eq.s32.totalorder %s38, 0
      %p344 = por %p342, %p343
      %p345 = scmp.ne.s32.totalorder %s333, %s334
      %p346 = scmp.eq.s32.totalorder %s39, 2
      %p347 = por %p345, %p346
      %p349 = scmp.ne.s32.totalorder %s334, %s348
      %p350 = scmp.eq.s32.totalorder %s39, 0
      %p351 = por %p349, %p350
      %s353 = sadd.s32 %s352, 1
      %p356 = scmp.eq.s32.totalorder %s33, 2
      %p357 = scmp.ne.s32.totalorder %s352, %s354
      %p358 = scmp.eq.s32.totalorder %s33, 0
      %p359 = por %p357, %p358
      %p360 = scmp.ne.s32.totalorder %s352, %s354
      %p361 = scmp.eq.s32.totalorder %s38, 2
      %p362 = por %p360, %p361
      %p363 = scmp.ne.s32.totalorder %s354, %s355
      %p364 = scmp.eq.s32.totalorder %s38, 0
      %p365 = por %p363, %p364
      %p366 = scmp.ne.s32.totalorder %s354, %s355
      %p367 = scmp.eq.s32.totalorder %s39, 2
      %p368 = por %p366, %p367
      %p370 = scmp.ne.s32.totalorder %s355, %s369
      %p371 = scmp.eq.s32.totalorder %s39, 0
      %p372 = por %p370, %p371
      %s374 = sadd.s32 %s373, 1
      %p377 = scmp.eq.s32.totalorder %s33, 2
      %p378 = scmp.ne.s32.totalorder %s373, %s375
      %p379 = scmp.eq.s32.totalorder %s33, 0
      %p380 = por %p378, %p379
      %p381 = scmp.ne.s32.totalorder %s373, %s375
      %p382 = scmp.eq.s32.totalorder %s38, 2
      %p383 = por %p381, %p382
      %p384 = scmp.ne.s32.totalorder %s375, %s376
      %p385 = scmp.eq.s32.totalorder %s38, 0
      %p386 = por %p384, %p385
      %p387 = scmp.ne.s32.totalorder %s375, %s376
      %p388 = scmp.eq.s32.totalorder %s39, 2
      %p389 = por %p387, %p388
      %p391 = scmp.ne.s32.totalorder %s376, %s390
      %p392 = scmp.eq.s32.totalorder %s39, 0
      %p393 = por %p391, %p392
      %s395 = sadd.s32 %s394, 1
      %p398 = scmp.eq.s32.totalorder %s33, 2
      %p399 = scmp.ne.s32.totalorder %s394, %s396
      %p400 = scmp.eq.s32.totalorder %s33, 0
      %p401 = por %p399, %p400
      %p402 = scmp.ne.s32.totalorder %s394, %s396
      %p403 = scmp.eq.s32.totalorder %s38, 2
      %p404 = por %p402, %p403
      %p405 = scmp.ne.s32.totalorder %s396, %s397
      %p406 = scmp.eq.s32.totalorder %s38, 0
      %p407 = por %p405, %p406
      %p408 = scmp.ne.s32.totalorder %s396, %s397
      %p409 = scmp.eq.s32.totalorder %s39, 2
      %p410 = por %p408, %p409
      %p412 = scmp.ne.s32.totalorder %s397, %s411
      %p413 = scmp.eq.s32.totalorder %s39, 0
      %p414 = por %p412, %p413
      %s416 = sadd.s32 %s415, 1
      %p419 = scmp.eq.s32.totalorder %s33, 2
      %p420 = scmp.ne.s32.totalorder %s415, %s417
      %p421 = scmp.eq.s32.totalorder %s33, 0
      %p422 = por %p420, %p421
      %p423 = scmp.ne.s32.totalorder %s415, %s417
      %p424 = scmp.eq.s32.totalorder %s38, 2
      %p425 = por %p423, %p424
      %p426 = scmp.ne.s32.totalorder %s417, %s418
      %p427 = scmp.eq.s32.totalorder %s38, 0
      %p428 = por %p426, %p427
      %p429 = scmp.ne.s32.totalorder %s417, %s418
      %p430 = scmp.eq.s32.totalorder %s39, 2
      %p431 = por %p429, %p430
      %p433 = scmp.ne.s32.totalorder %s418, %s432
      %p434 = scmp.eq.s32.totalorder %s39, 0
      %p435 = por %p433, %p434
      %s436 = ssub.s32 %s40, %s52
      %p437 = scmp.eq.s32.totalorder %s436, 0
      %s439 = sadd.s32 %s438, 1
      %s440 = scalar_select %p437, %s438, %s439
      %p443 = pneg %p437
      %p444 = scmp.eq.s32.totalorder %s33, 2
      %p445 = por %p443, %p444
      %p446 = scmp.ne.s32.totalorder %s438, %s441
      %p447 = scmp.eq.s32.totalorder %s33, 0
      %p448 = por %p446, %p447
      %p449 = scmp.ne.s32.totalorder %s438, %s441
      %p450 = scmp.eq.s32.totalorder %s38, 2
      %p451 = por %p449, %p450
      %p452 = scmp.ne.s32.totalorder %s441, %s442
      %p453 = scmp.eq.s32.totalorder %s38, 0
      %p454 = por %p452, %p453
      %p455 = scmp.ne.s32.totalorder %s441, %s442
      %p456 = scmp.eq.s32.totalorder %s39, 2
      %p457 = por %p455, %p456
      %p459 = scmp.ne.s32.totalorder %s442, %s458
      %p460 = scmp.eq.s32.totalorder %s39, 0
      %p461 = por %p459, %p460
      %s462 = ssub.s32 %s40, %s52
      %p463 = scmp.eq.s32.totalorder %s462, 0
      %s465 = sadd.s32 %s464, 1
      %s466 = scalar_select %p463, %s464, %s465
      %p469 = pneg %p463
      %p470 = scmp.eq.s32.totalorder %s33, 2
      %p471 = por %p469, %p470
      %p472 = scmp.ne.s32.totalorder %s464, %s467
      %p473 = scmp.eq.s32.totalorder %s33, 0
      %p474 = por %p472, %p473
      %p475 = scmp.ne.s32.totalorder %s464, %s467
      %p476 = scmp.eq.s32.totalorder %s38, 2
      %p477 = por %p475, %p476
      %p478 = scmp.ne.s32.totalorder %s467, %s468
      %p479 = scmp.eq.s32.totalorder %s38, 0
      %p480 = por %p478, %p479
      %p481 = scmp.ne.s32.totalorder %s467, %s468
      %p482 = scmp.eq.s32.totalorder %s39, 2
      %p483 = por %p481, %p482
      %p485 = scmp.ne.s32.totalorder %s468, %s484
      %p486 = scmp.eq.s32.totalorder %s39, 0
      %p487 = por %p485, %p486
      %p488 = scmp.le.s32.totalorder 1, %s33
      %p489 = scmp.lt.s32.totalorder %s33, 4
      %p490 = pnand %p488, %p489
      %p491 = pneg %p490
      // Predicated region
      $region9: #{tpu_custom_call.1} parent=5 // pred_check
        _
      $region10: #{tpu_custom_call.1} parent=5 // pred_check_branch
        %493 = sbr.rel (%p490) target = $region12
      $region11: #{tpu_custom_call.1} parent=5 // pred_region
        %s494 = ssub.s32 %s33, 1
        // Predicated region
        $region13: #{tpu_custom_call.1} parent=11 // pred_check
          %p495 = pneg %p99
        $region14: #{tpu_custom_call.1} parent=11 // pred_check_branch
          %497 = sbr.rel (%p495) target = $region16
        $region15: #{tpu_custom_call.1} parent=11 // pred_region
          %s499 = ssub.s32 64, 64
          %500 = vsyncadd [#allocation8], %s499
          %s501 = smul.addr %s42, 64
          %s502 = scalar_lea.hbm %s1, %s501
          %s504 = sshll.u32 [#allocation7], 4
          %s505 = int_to_ptr.vmem [resolvable:$true] %s504
          %507 = dma.hbm_to_vmem [thread:$0]  %s502, 64, %s505, [#allocation8]
        $region16: #{tpu_custom_call.1} parent=11 // pred_fallthru
          _
        // Predicated region
        $region17: #{tpu_custom_call.1} parent=11 // pred_check
          %p508 = pneg %p198
        $region18: #{tpu_custom_call.1} parent=11 // pred_check_branch
          %510 = sbr.rel (%p508) target = $region20
        $region19: #{tpu_custom_call.1} parent=11 // pred_region
          %s512 = ssub.s32 16, 16
          %513 = vsyncadd [#allocation6], %s512
          %s515 = sshll.u32 %s5, 4
          %s516 = int_to_ptr.vmem [resolvable:$true] %s515
          %518 = dma.vmem_to_smem %s516, 16, [#allocation12], [#allocation6]
        $region20: #{tpu_custom_call.1} parent=11 // pred_fallthru
          _
        // Predicated region
        $region21: #{tpu_custom_call.1} parent=11 // pred_check
          %p519 = pneg %p276
        $region22: #{tpu_custom_call.1} parent=11 // pred_check_branch
          %521 = sbr.rel (%p519) target = $region24
        $region23: #{tpu_custom_call.1} parent=11 // pred_region
          %s522 = smul.u32 4, %s42
          %p523 = scmp.lt.s32.totalorder %s522, 3
          %s524 = scalar_select %p523, %s522, 3
          %s525 = smul.addr %s524, 4
          %s526 = scalar_lea.vmem %s8, %s525
          %s527 = smul.u32 4, %s42
        $region24: #{tpu_custom_call.1} parent=11 // pred_fallthru
          _
        // Predicated region
        $region25: #{tpu_custom_call.1} parent=11 // pred_check
          %p528 = pneg %p302
        $region26: #{tpu_custom_call.1} parent=11 // pred_check_branch
          %530 = sbr.rel (%p528) target = $region28
        $region27: #{tpu_custom_call.1} parent=11 // pred_region
          %s532 = ssub.s32 64, 64
          %533 = vsyncadd [#allocation8], %s532
          %s534 = smul.addr %s42, 64
          %s535 = scalar_lea.hbm %s9, %s534
          %s537 = sshll.u32 [#allocation15], 4
          %s538 = int_to_ptr.vmem [resolvable:$true] %s537
          %540 = dma.hbm_to_vmem [thread:$0]  %s535, 64, %s538, [#allocation8]
        $region28: #{tpu_custom_call.1} parent=11 // pred_fallthru
          _
        // Predicated region
        $region29: #{tpu_custom_call.1} parent=11 // pred_check
          %p541 = pneg %p323
        $region30: #{tpu_custom_call.1} parent=11 // pred_check_branch
          %543 = sbr.rel (%p541) target = $region32
        $region31: #{tpu_custom_call.1} parent=11 // pred_region
          _
        $region32: #{tpu_custom_call.1} parent=11 // pred_fallthru
          _
        // Predicated region
        $region33: #{tpu_custom_call.1} parent=11 // pred_check
          %p544 = pneg %p344
        $region34: #{tpu_custom_call.1} parent=11 // pred_check_branch
          %546 = sbr.rel (%p544) target = $region36
        $region35: #{tpu_custom_call.1} parent=11 // pred_region
          %s548 = ssub.s32 16, 16
          %549 = vsyncadd [#allocation17], %s548
          %s551 = sshll.u32 [#allocation16], 4
          %s552 = int_to_ptr.vmem [resolvable:$true] %s551
          %554 = dma.hbm_to_vmem [thread:$0]  %s11, 16, %s552, [#allocation17]
        $region36: #{tpu_custom_call.1} parent=11 // pred_fallthru
          _
        // Predicated region
        $region37: #{tpu_custom_call.1} parent=11 // pred_check
          %p555 = pneg %p365
        $region38: #{tpu_custom_call.1} parent=11 // pred_check_branch
          %557 = sbr.rel (%p555) target = $region40
        $region39: #{tpu_custom_call.1} parent=11 // pred_region
          %s559 = ssub.s32 16, 16
          %560 = vsyncadd [#allocation17], %s559
          %s562 = sshll.u32 [#allocation18], 4
          %s563 = int_to_ptr.vmem [resolvable:$true] %s562
          %565 = dma.hbm_to_vmem [thread:$0]  %s12, 16, %s563, [#allocation17]
        $region40: #{tpu_custom_call.1} parent=11 // pred_fallthru
          _
        // Predicated region
        $region41: #{tpu_custom_call.1} parent=11 // pred_check
          %p566 = pneg %p386
        $region42: #{tpu_custom_call.1} parent=11 // pred_check_branch
          %568 = sbr.rel (%p566) target = $region44
        $region43: #{tpu_custom_call.1} parent=11 // pred_region
          _
        $region44: #{tpu_custom_call.1} parent=11 // pred_fallthru
          _
        // Predicated region
        $region45: #{tpu_custom_call.1} parent=11 // pred_check
          %p569 = pneg %p407
        $region46: #{tpu_custom_call.1} parent=11 // pred_check_branch
          %571 = sbr.rel (%p569) target = $region48
        $region47: #{tpu_custom_call.1} parent=11 // pred_region
          _
        $region48: #{tpu_custom_call.1} parent=11 // pred_fallthru
          _
        // Predicated region
        $region49: #{tpu_custom_call.1} parent=11 // pred_check
          %p572 = pneg %p428
        $region50: #{tpu_custom_call.1} parent=11 // pred_check_branch
          %574 = sbr.rel (%p572) target = $region52
        $region51: #{tpu_custom_call.1} parent=11 // pred_region
          _
        $region52: #{tpu_custom_call.1} parent=11 // pred_fallthru
          _
      $region12: #{tpu_custom_call.1} parent=5 // pred_fallthru
        _
      %p575 = scmp.lt.s32.totalorder %s33, 3
      // Predicated region
      $region53: #{tpu_custom_call.1} parent=5 // pred_check
        %p576 = pneg %p575
      $region54: #{tpu_custom_call.1} parent=5 // pred_check_branch
        %578 = sbr.rel (%p576) target = $region56
      $region55: #{tpu_custom_call.1} parent=5 // pred_region
        // Predicated region
        $region57: #{tpu_custom_call.1} parent=55 // pred_check
          %p579 = pneg %p67
        $region58: #{tpu_custom_call.1} parent=55 // pred_check_branch
          %581 = sbr.rel (%p579) target = $region60
        $region59: #{tpu_custom_call.1} parent=55 // pred_region
          %s582 = sand.u32 %s33, 1
          %s583 = scalar_lea.sflag [#allocation4], %s582
          %s584 = sand.u32 %s57, 1
          %s585 = smul.addr %s584, 32
          %s586 = scalar_lea.vmem [#allocation3], %s585
          %s587 = smul.u32 4, %s40
          %s589 = ssub.s32 512, 512
          %590 = vsyncadd %s583, %s589
          %s591 = smul.addr %s587, 2
          %s592 = smul.addr %s41, 8
          %s593 = sadd.s32 %s591, %s592
          %s594 = smul.addr %s593, 64
          %s595 = scalar_lea.hbm %s0, %s594
          %s596 = sshll.u32 %s586, 4
          %s597 = int_to_ptr.vmem [resolvable:$true] %s596
          %602 = dma.hbm_to_vmem [thread:$0]  %s595, 512, %s597, %s583, 64, 64, 4
        $region60: #{tpu_custom_call.1} parent=55 // pred_fallthru
          _
        // Predicated region
        $region61: #{tpu_custom_call.1} parent=55 // pred_check
          %p603 = pneg %p119
        $region62: #{tpu_custom_call.1} parent=55 // pred_check_branch
          %605 = sbr.rel (%p603) target = $region64
        $region63: #{tpu_custom_call.1} parent=55 // pred_region
          %s606 = sand.u32 %s33, 1
          %s607 = scalar_lea.sflag [#allocation4], %s606
          %s608 = sand.u32 %s109, 1
          %s609 = smul.addr %s608, 16
          %s610 = scalar_lea.vmem [#allocation9], %s609
          %s612 = ssub.s32 256, 256
          %613 = vsyncadd %s607, %s612
          %s614 = smul.addr %s41, 4
          %s615 = smul.addr %s614, 64
          %s616 = scalar_lea.hbm %s2, %s615
          %s617 = sshll.u32 %s610, 4
          %s618 = int_to_ptr.vmem [resolvable:$true] %s617
          %623 = dma.hbm_to_vmem [thread:$0]  %s616, 256, %s618, %s607, 64, 64, 4
        $region64: #{tpu_custom_call.1} parent=55 // pred_fallthru
          _
        // Predicated region
        $region65: #{tpu_custom_call.1} parent=55 // pred_check
          %p624 = pneg %p145
        $region66: #{tpu_custom_call.1} parent=55 // pred_check_branch
          %626 = sbr.rel (%p624) target = $region68
        $region67: #{tpu_custom_call.1} parent=55 // pred_region
          %s627 = sand.u32 %s33, 1
          %s628 = scalar_lea.sflag [#allocation4], %s627
          %s629 = sand.u32 %s135, 1
          %s630 = scalar_lea.vmem [#allocation10], %s629
          %s632 = ssub.s32 16, 16
          %633 = vsyncadd %s628, %s632
          %s634 = smul.addr %s41, 16
          %s635 = scalar_lea.hbm %s3, %s634
          %s637 = sshll.u32 %s630, 4
          %s638 = int_to_ptr.vmem [resolvable:$true] %s637
          %640 = dma.hbm_to_vmem [thread:$0]  %s635, 16, %s638, %s628
        $region68: #{tpu_custom_call.1} parent=55 // pred_fallthru
          _
        // Predicated region
        $region69: #{tpu_custom_call.1} parent=55 // pred_check
          %p641 = pneg %p171
        $region70: #{tpu_custom_call.1} parent=55 // pred_check_branch
          %643 = sbr.rel (%p641) target = $region72
        $region71: #{tpu_custom_call.1} parent=55 // pred_region
          %s644 = sand.u32 %s33, 1
          %s645 = scalar_lea.sflag [#allocation4], %s644
          %s646 = sand.u32 %s161, 1
          %s647 = scalar_lea.vmem [#allocation11], %s646
          %s649 = ssub.s32 16, 16
          %650 = vsyncadd %s645, %s649
          %s651 = smul.addr %s41, 16
          %s652 = scalar_lea.hbm %s4, %s651
          %s654 = sshll.u32 %s647, 4
          %s655 = int_to_ptr.vmem [resolvable:$true] %s654
          %657 = dma.hbm_to_vmem [thread:$0]  %s652, 16, %s655, %s645
        $region72: #{tpu_custom_call.1} parent=55 // pred_fallthru
          _
        // Predicated region
        $region73: #{tpu_custom_call.1} parent=55 // pred_check
          %p658 = pneg %p218
        $region74: #{tpu_custom_call.1} parent=55 // pred_check_branch
          %660 = sbr.rel (%p658) target = $region76
        $region75: #{tpu_custom_call.1} parent=55 // pred_region
          %s661 = sand.u32 %s33, 1
          %s662 = scalar_lea.sflag [#allocation4], %s661
          %s663 = sand.u32 %s208, 1
          %s664 = smul.addr %s663, 16
          %s665 = scalar_lea.vmem [#allocation13], %s664
          %s667 = ssub.s32 256, 256
          %668 = vsyncadd %s662, %s667
          %s669 = smul.addr %s41, 4
          %s670 = smul.addr %s669, 64
          %s671 = scalar_lea.hbm %s6, %s670
          %s672 = sshll.u32 %s665, 4
          %s673 = int_to_ptr.vmem [resolvable:$true] %s672
          %678 = dma.hbm_to_vmem [thread:$0]  %s671, 256, %s673, %s662, 64, 64, 4
        $region76: #{tpu_custom_call.1} parent=55 // pred_fallthru
          _
        // Predicated region
        $region77: #{tpu_custom_call.1} parent=55 // pred_check
          %p679 = pneg %p244
        $region78: #{tpu_custom_call.1} parent=55 // pred_check_branch
          %681 = sbr.rel (%p679) target = $region80
        $region79: #{tpu_custom_call.1} parent=55 // pred_region
          %s682 = sand.u32 %s33, 1
          %s683 = scalar_lea.sflag [#allocation4], %s682
          %s684 = sand.u32 %s234, 1
          %s685 = scalar_lea.vmem [#allocation14], %s684
          %s687 = ssub.s32 16, 16
          %688 = vsyncadd %s683, %s687
          %s689 = smul.addr %s41, 16
          %s690 = scalar_lea.hbm %s7, %s689
          %s692 = sshll.u32 %s685, 4
          %s693 = int_to_ptr.vmem [resolvable:$true] %s692
          %695 = dma.hbm_to_vmem [thread:$0]  %s690, 16, %s693, %s683
        $region80: #{tpu_custom_call.1} parent=55 // pred_fallthru
          _
      $region56: #{tpu_custom_call.1} parent=5 // pred_fallthru
        _
      %p696 = scmp.le.s32.totalorder 1, %s33
      %p697 = scmp.lt.s32.totalorder %s33, 4
      %p698 = pnand %p696, %p697
      %p699 = pneg %p698
      // Predicated region
      $region81: #{tpu_custom_call.1} parent=5 // pred_check
        _
      $region82: #{tpu_custom_call.1} parent=5 // pred_check_branch
        %701 = sbr.rel (%p698) target = $region84
      $region83: #{tpu_custom_call.1} parent=5 // pred_region
        %s702 = ssub.s32 %s33, 1
        %s703 = sand.u32 %s38, 1
        %s704 = scalar_lea.sflag [#allocation4], %s703
        %s705 = sand.u32 %s60, 1
        %s706 = smul.addr %s705, 32
        %s707 = scalar_lea.vmem [#allocation3], %s706
        // Predicated region
        $region85: #{tpu_custom_call.1} parent=83 // pred_check
          %p708 = pneg %p73
        $region86: #{tpu_custom_call.1} parent=83 // pred_check_branch
          %710 = sbr.rel (%p708) target = $region88
        $region87: #{tpu_custom_call.1} parent=83 // pred_region
          %711 = dma.done %s704, 512
        $region88: #{tpu_custom_call.1} parent=83 // pred_fallthru
          _
        // Predicated region
        $region89: #{tpu_custom_call.1} parent=83 // pred_check
          %p712 = pneg %p99
        $region90: #{tpu_custom_call.1} parent=83 // pred_check_branch
          %714 = sbr.rel (%p712) target = $region92
        $region91: #{tpu_custom_call.1} parent=83 // pred_region
          %715 = dma.done [#allocation8], 64
        $region92: #{tpu_custom_call.1} parent=83 // pred_fallthru
          _
        %s716 = sand.u32 %s38, 1
        %s717 = scalar_lea.sflag [#allocation4], %s716
        %s718 = sand.u32 %s112, 1
        %s719 = smul.addr %s718, 16
        %s720 = scalar_lea.vmem [#allocation9], %s719
        // Predicated region
        $region93: #{tpu_custom_call.1} parent=83 // pred_check
          %p721 = pneg %p125
        $region94: #{tpu_custom_call.1} parent=83 // pred_check_branch
          %723 = sbr.rel (%p721) target = $region96
        $region95: #{tpu_custom_call.1} parent=83 // pred_region
          %724 = dma.done %s717, 256
        $region96: #{tpu_custom_call.1} parent=83 // pred_fallthru
          _
        %s725 = sand.u32 %s38, 1
        %s726 = scalar_lea.sflag [#allocation4], %s725
        %s727 = sand.u32 %s138, 1
        %s728 = scalar_lea.vmem [#allocation10], %s727
        // Predicated region
        $region97: #{tpu_custom_call.1} parent=83 // pred_check
          %p729 = pneg %p151
        $region98: #{tpu_custom_call.1} parent=83 // pred_check_branch
          %731 = sbr.rel (%p729) target = $region100
        $region99: #{tpu_custom_call.1} parent=83 // pred_region
          %732 = dma.done %s726, 16
        $region100: #{tpu_custom_call.1} parent=83 // pred_fallthru
          _
        %s733 = sand.u32 %s38, 1
        %s734 = scalar_lea.sflag [#allocation4], %s733
        %s735 = sand.u32 %s164, 1
        %s736 = scalar_lea.vmem [#allocation11], %s735
        // Predicated region
        $region101: #{tpu_custom_call.1} parent=83 // pred_check
          %p737 = pneg %p177
        $region102: #{tpu_custom_call.1} parent=83 // pred_check_branch
          %739 = sbr.rel (%p737) target = $region104
        $region103: #{tpu_custom_call.1} parent=83 // pred_region
          %740 = dma.done %s734, 16
        $region104: #{tpu_custom_call.1} parent=83 // pred_fallthru
          _
        // Predicated region
        $region105: #{tpu_custom_call.1} parent=83 // pred_check
          %p741 = pneg %p198
        $region106: #{tpu_custom_call.1} parent=83 // pred_check_branch
          %743 = sbr.rel (%p741) target = $region108
        $region107: #{tpu_custom_call.1} parent=83 // pred_region
          %744 = dma.done [#allocation6], 16
        $region108: #{tpu_custom_call.1} parent=83 // pred_fallthru
          _
        %s745 = sand.u32 %s38, 1
        %s746 = scalar_lea.sflag [#allocation4], %s745
        %s747 = sand.u32 %s211, 1
        %s748 = smul.addr %s747, 16
        %s749 = scalar_lea.vmem [#allocation13], %s748
        // Predicated region
        $region109: #{tpu_custom_call.1} parent=83 // pred_check
          %p750 = pneg %p224
        $region110: #{tpu_custom_call.1} parent=83 // pred_check_branch
          %752 = sbr.rel (%p750) target = $region112
        $region111: #{tpu_custom_call.1} parent=83 // pred_region
          %753 = dma.done %s746, 256
        $region112: #{tpu_custom_call.1} parent=83 // pred_fallthru
          _
        %s754 = sand.u32 %s38, 1
        %s755 = scalar_lea.sflag [#allocation4], %s754
        %s756 = sand.u32 %s237, 1
        %s757 = scalar_lea.vmem [#allocation14], %s756
        // Predicated region
        $region113: #{tpu_custom_call.1} parent=83 // pred_check
          %p758 = pneg %p250
        $region114: #{tpu_custom_call.1} parent=83 // pred_check_branch
          %760 = sbr.rel (%p758) target = $region116
        $region115: #{tpu_custom_call.1} parent=83 // pred_region
          %761 = dma.done %s755, 16
        $region116: #{tpu_custom_call.1} parent=83 // pred_fallthru
          _
        // Predicated region
        $region117: #{tpu_custom_call.1} parent=83 // pred_check
          %p762 = pneg %p302
        $region118: #{tpu_custom_call.1} parent=83 // pred_check_branch
          %764 = sbr.rel (%p762) target = $region120
        $region119: #{tpu_custom_call.1} parent=83 // pred_region
          %765 = dma.done [#allocation8], 64
        $region120: #{tpu_custom_call.1} parent=83 // pred_fallthru
          _
        // Predicated region
        $region121: #{tpu_custom_call.1} parent=83 // pred_check
          %p766 = pneg %p344
        $region122: #{tpu_custom_call.1} parent=83 // pred_check_branch
          %768 = sbr.rel (%p766) target = $region124
        $region123: #{tpu_custom_call.1} parent=83 // pred_region
          %769 = dma.done [#allocation17], 16
        $region124: #{tpu_custom_call.1} parent=83 // pred_fallthru
          _
        // Predicated region
        $region125: #{tpu_custom_call.1} parent=83 // pred_check
          %p770 = pneg %p365
        $region126: #{tpu_custom_call.1} parent=83 // pred_check_branch
          %772 = sbr.rel (%p770) target = $region128
        $region127: #{tpu_custom_call.1} parent=83 // pred_region
          %773 = dma.done [#allocation17], 16
        $region128: #{tpu_custom_call.1} parent=83 // pred_fallthru
          _
        %774 = sfence
        %s775 = sand.u32 %s38, 1
        %s776 = scalar_lea.sflag [#allocation4], %s775
        %s777 = sand.u32 %s60, 1
        %s778 = smul.addr %s777, 32
        %s779 = scalar_lea.vmem [#allocation3], %s778
        %p780 = pneg %p73
        %p781 = pneg %p70
        %p782 = pneg %p99
        %p783 = pneg %p96
        %s784 = sand.u32 %s38, 1
        %s785 = scalar_lea.sflag [#allocation4], %s784
        %s786 = sand.u32 %s112, 1
        %s787 = smul.addr %s786, 16
        %s788 = scalar_lea.vmem [#allocation9], %s787
        %p789 = pneg %p125
        %p790 = pneg %p122
        %s791 = sand.u32 %s38, 1
        %s792 = scalar_lea.sflag [#allocation4], %s791
        %s793 = sand.u32 %s138, 1
        %s794 = scalar_lea.vmem [#allocation10], %s793
        %p795 = pneg %p151
        %p796 = pneg %p148
        %s797 = sand.u32 %s38, 1
        %s798 = scalar_lea.sflag [#allocation4], %s797
        %s799 = sand.u32 %s164, 1
        %s800 = scalar_lea.vmem [#allocation11], %s799
        %p801 = pneg %p177
        %p802 = pneg %p174
        %p803 = pneg %p198
        %p804 = pneg %p195
        %s805 = sand.u32 %s38, 1
        %s806 = scalar_lea.sflag [#allocation4], %s805
        %s807 = sand.u32 %s211, 1
        %s808 = smul.addr %s807, 16
        %s809 = scalar_lea.vmem [#allocation13], %s808
        %p810 = pneg %p224
        %p811 = pneg %p221
        %s812 = sand.u32 %s38, 1
        %s813 = scalar_lea.sflag [#allocation4], %s812
        %s814 = sand.u32 %s237, 1
        %s815 = scalar_lea.vmem [#allocation14], %s814
        %p816 = pneg %p250
        %p817 = pneg %p247
        %s818 = smul.u32 4, %s42
        %p819 = scmp.lt.s32.totalorder %s818, 3
        %s820 = scalar_select %p819, %s818, 3
        %s821 = smul.addr %s820, 4
        %s822 = scalar_lea.vmem %s8, %s821
        %p823 = pneg %p276
        %p824 = pneg %p273
        %p825 = pneg %p302
        %p826 = pneg %p299
        %p827 = pneg %p323
        %p828 = pneg %p320
        %p829 = pneg %p344
        %p830 = pneg %p341
        %p831 = pneg %p365
        %p832 = pneg %p362
        %p833 = pneg %p386
        %p834 = pneg %p383
        %p835 = pneg %p407
        %p836 = pneg %p404
        %p837 = pneg %p428
        %p838 = pneg %p425
        %p839 = pneg %p454
        %p840 = pneg %p451
        %p841 = pneg %p480
        %p842 = pneg %p477
        %s843 = smul.u32 4, %s42
        %s844 = smul.u32 4, %s42
        %p845 = scmp.lt.s32.totalorder %s844, 3
        %s846 = scalar_select %p845, %s844, 3
        %s847 = smul.addr %s846, 4
        %s848 = scalar_lea.vmem %s8, %s847
        %s849 = smul.u32 4, %s42
        %v851 = vld [vmem:[%s707] sm:$0xf]
        %v852 = vld [vmem:[%s707 + $0x4] sm:$0xf]
        %v853 = vld [vmem:[%s707 + $0x8] sm:$0xf]
        %v854 = vld [vmem:[%s707 + $0xc] sm:$0xf]
        %v855 = vld [vmem:[%s707 + $0x10] sm:$0xf]
        %v856 = vld [vmem:[%s707 + $0x14] sm:$0xf]
        %v857 = vld [vmem:[%s707 + $0x18] sm:$0xf]
        %v858 = vld [vmem:[%s707 + $0x1c] sm:$0xf]
        %v859 = vld [vmem:[#allocation7] sm:$0xf]
        %v860 = vld [vmem:[%s720] sm:$0xf]
        %v861 = vld [vmem:[%s720 + $0x4] sm:$0xf]
        %v862 = vld [vmem:[%s720 + $0x8] sm:$0xf]
        %v863 = vld [vmem:[%s720 + $0xc] sm:$0xf]
        %v864 = vld [vmem:[%s728] sm:$0x1]
        %v865 = vld [vmem:[%s736] sm:$0x1]
        %s866 = sld [smem:[#allocation12 + %s43]]
        %v867 = vld [vmem:[%s749] sm:$0xf]
        %v868 = vld [vmem:[%s749 + $0x4] sm:$0xf]
        %v869 = vld [vmem:[%s749 + $0x8] sm:$0xf]
        %v870 = vld [vmem:[%s749 + $0xc] sm:$0xf]
        %v871 = vld [vmem:[%s757] sm:$0x1]
        %v873 = vlaneseq
        %v874 = vshrl.u32 %v873, 7
        %v875 = vsub.s32 0, %v874
        %v876 = vrot.slane %v864, %v875
        %v886 = vunpack.c.l.b16 %v851
        %v887 = vunpack.c.l.b16 %v852
        %v888 = vunpack.c.l.b16 %v853
        %v889 = vunpack.c.l.b16 %v854
        %v890 = vunpack.c.l.b16 %v855
        %v891 = vunpack.c.l.b16 %v856
        %v892 = vunpack.c.l.b16 %v857
        %v893 = vunpack.c.l.b16 %v858
        %v894 = vpack.c.b16 %v887, %v886
        %v895 = vpack.c.b16 %v889, %v888
        %v896 = vpack.c.b16 %v891, %v890
        %v897 = vpack.c.b16 %v893, %v892
        %v902 = vunpack.c.l.b16 %v860
        %v903 = vunpack.c.l.b16 %v861
        %v904 = vunpack.c.l.b16 %v862
        %v905 = vunpack.c.l.b16 %v863
        %v906 = vpack.c.b16 %v903, %v902
        %v907 = vpack.c.b16 %v905, %v904
        %vm910 = vcmask 261120
        %v912 = vsel %vm910, %v894, 0
        %v915 = vsel %vm910, %v895, 0
        %v918 = vsel %vm910, %v896, 0
        %v921 = vsel %vm910, %v897, 0
        %923 = vmatprep.subr.bf16.mxu0 0
        %924 = vmatpush1.bf16.msra.mxu0 %v906
        %925 = vmatprep.subr.bf16.mxu0 0
        %926 = vmatpush1.bf16.msra.mxu0 %v907
        %927 = vmatprep.subr.bf16.mxu0 0
        %928 = vmatpush1.bf16.msra.mxu0 0
        %929 = vmatprep.subr.bf16.mxu0 0
        %930 = vmatpush1.bf16.msra.mxu0 0
        %931 = vmatprep.subr.bf16.mxu0 0
        %932 = vmatpush1.bf16.msra.mxu0 0
        %933 = vmatprep.subr.bf16.mxu0 0
        %934 = vmatpush1.bf16.msra.mxu0 0
        %935 = vmatprep.subr.bf16.mxu0 0
        %936 = vmatpush1.bf16.msra.mxu0 0
        %937 = vmatprep.subr.bf16.mxu0 0
        %938 = vmatpush1.bf16.msra.mxu0 0
        %939 = vmatprep.subr.bf16.mxu0 0
        %940 = vmatpush1.bf16.msra.mxu0 0
        %941 = vmatprep.subr.bf16.mxu0 0
        %942 = vmatpush1.bf16.msra.mxu0 0
        %943 = vmatprep.subr.bf16.mxu0 0
        %944 = vmatpush1.bf16.msra.mxu0 0
        %945 = vmatprep.subr.bf16.mxu0 0
        %946 = vmatpush1.bf16.msra.mxu0 0
        %947 = vmatprep.subr.bf16.mxu0 0
        %948 = vmatpush1.bf16.msra.mxu0 0
        %949 = vmatprep.subr.bf16.mxu0 0
        %950 = vmatpush1.bf16.msra.mxu0 0
        %951 = vmatprep.subr.bf16.mxu0 0
        %952 = vmatpush1.bf16.msra.mxu0 0
        %953 = vmatprep.subr.bf16.mxu0 0
        %954 = vmatpush1.bf16.msra.mxu0 0
        %955 = vmatprep.mubr.bf16.mxu0 0
        %956 = vmatmul.mubr.bf16.gmra.mrb[0].mxu0 %v912
        %v957 = vpop.f32.mrb[0].mxu0
        %v958 = vadd.f32 %v876, %v957
        %v959 = vpop.f32.mrb[0].mxu0
        %v960 = vpop.f32.mrb[0].mxu0
        %v961 = vadd.f32 %v876, %v960
        %v962 = vpop.f32.mrb[0].mxu0
        %963 = vmatprep.mubr.bf16.mxu0 0
        %964 = vmatmul.mubr.bf16.gmra.mrb[0].mxu0 %v915
        %v965 = vpop.f32.mrb[0].mxu0
        %v966 = vadd.f32 %v876, %v965
        %v967 = vpop.f32.mrb[0].mxu0
        %v968 = vpop.f32.mrb[0].mxu0
        %v969 = vadd.f32 %v876, %v968
        %v970 = vpop.f32.mrb[0].mxu0
        %971 = vmatprep.mubr.bf16.mxu0 0
        %972 = vmatmul.mubr.bf16.gmra.mrb[0].mxu0 %v918
        %v973 = vpop.f32.mrb[0].mxu0
        %v974 = vadd.f32 %v876, %v973
        %v975 = vpop.f32.mrb[0].mxu0
        %v976 = vpop.f32.mrb[0].mxu0
        %v977 = vadd.f32 %v876, %v976
        %v978 = vpop.f32.mrb[0].mxu0
        %979 = vmatprep.mubr.bf16.mxu0 0
        %980 = vmatmul.mubr.bf16.gmra.mrb[0].mxu0 %v921
        %v981 = vpop.f32.mrb[0].mxu0
        %v982 = vadd.f32 %v876, %v981
        %v983 = vpop.f32.mrb[0].mxu0
        %v984 = vpop.f32.mrb[0].mxu0
        %v985 = vadd.f32 %v876, %v984
        %v986 = vpop.f32.mrb[0].mxu0
        %987 = vdwg.mxu0
        %v988 = vmax.f32 %v958, 0.0
        %v989 = vmax.f32 %v961, 0.0
        %v990 = vmax.f32 %v966, 0.0
        %v991 = vmax.f32 %v969, 0.0
        %v992 = vmax.f32 %v974, 0.0
        %v993 = vmax.f32 %v977, 0.0
        %v994 = vmax.f32 %v982, 0.0
        %v995 = vmax.f32 %v985, 0.0
        %v997 = vlaneseq
        %v998 = vshrl.u32 %v997, 7
        %v999 = vsub.s32 0, %v998
        %v1000 = vrot.slane %v865, %v999
        %v1002 = vmul.f32 %v988, %v1000
        %v1003 = vmul.f32 %v989, %v1000
        %v1004 = vmul.f32 %v990, %v1000
        %v1005 = vmul.f32 %v991, %v1000
        %v1006 = vmul.f32 %v992, %v1000
        %v1007 = vmul.f32 %v993, %v1000
        %v1008 = vmul.f32 %v994, %v1000
        %v1009 = vmul.f32 %v995, %v1000
        %v1010 = vsel %vm910, %v1002, 0.0
        %1011 = vadd.xlane.f32.xlu0 %v1010
        %v1012 = vpop.xlane.xlu0 %1011
        %v1013 = vsel %vm910, %v1003, 0.0
        %1014 = vadd.xlane.f32.xlu0 %v1013
        %v1015 = vpop.xlane.xlu0 %1014
        %v1016 = vsel %vm910, %v1004, 0.0
        %1017 = vadd.xlane.f32.xlu0 %v1016
        %v1018 = vpop.xlane.xlu0 %1017
        %v1019 = vsel %vm910, %v1005, 0.0
        %1020 = vadd.xlane.f32.xlu0 %v1019
        %v1021 = vpop.xlane.xlu0 %1020
        %v1022 = vsel %vm910, %v1006, 0.0
        %1023 = vadd.xlane.f32.xlu0 %v1022
        %v1024 = vpop.xlane.xlu0 %1023
        %v1025 = vsel %vm910, %v1007, 0.0
        %1026 = vadd.xlane.f32.xlu0 %v1025
        %v1027 = vpop.xlane.xlu0 %1026
        %v1028 = vsel %vm910, %v1008, 0.0
        %1029 = vadd.xlane.f32.xlu0 %v1028
        %v1030 = vpop.xlane.xlu0 %1029
        %v1031 = vsel %vm910, %v1009, 0.0
        %1032 = vadd.xlane.f32.xlu0 %v1031
        %v1033 = vpop.xlane.xlu0 %1032
        %v1034 = vstv %s866
        %v1035 = vadd.f32 %v1012, %v1034
        %v1036 = vadd.f32 %v1015, %v1034
        %v1037 = vadd.f32 %v1018, %v1034
        %v1038 = vadd.f32 %v1021, %v1034
        %v1039 = vadd.f32 %v1024, %v1034
        %v1040 = vadd.f32 %v1027, %v1034
        %v1041 = vadd.f32 %v1030, %v1034
        %v1042 = vadd.f32 %v1033, %v1034
        %v1044 = vlaneseq
        %v1045 = vshrl.u32 %v1044, 7
        %v1046 = vsub.s32 0, %v1045
        %v1047 = vrot.slane %v859, %v1046
        %1049 = vbcast.lane.b32.xlu0 %v1047, 256
        %v1050 = vpop.permute.xlu0 %1049
        %s1052 = sor.u32 256, 8
        %1053 = vbcast.lane.b32.xlu0 %v1047, %s1052
        %v1054 = vpop.permute.xlu0 %1053
        %v1055 = vlaneseq
        %v1056 = vshrl.u32 %v1055, 7
        %v1057 = vsub.s32 1, %v1056
        %v1058 = vrot.slane %v859, %v1057
        %1060 = vbcast.lane.b32.xlu0 %v1058, 256
        %v1061 = vpop.permute.xlu0 %1060
        %s1063 = sor.u32 256, 8
        %1064 = vbcast.lane.b32.xlu0 %v1058, %s1063
        %v1065 = vpop.permute.xlu0 %1064
        %v1066 = vlaneseq
        %v1067 = vshrl.u32 %v1066, 7
        %v1068 = vsub.s32 2, %v1067
        %v1069 = vrot.slane %v859, %v1068
        %1071 = vbcast.lane.b32.xlu0 %v1069, 256
        %v1072 = vpop.permute.xlu0 %1071
        %s1074 = sor.u32 256, 8
        %1075 = vbcast.lane.b32.xlu0 %v1069, %s1074
        %v1076 = vpop.permute.xlu0 %1075
        %v1077 = vlaneseq
        %v1078 = vshrl.u32 %v1077, 7
        %v1079 = vsub.s32 3, %v1078
        %v1080 = vrot.slane %v859, %v1079
        %1082 = vbcast.lane.b32.xlu0 %v1080, 256
        %v1083 = vpop.permute.xlu0 %1082
        %s1085 = sor.u32 256, 8
        %1086 = vbcast.lane.b32.xlu0 %v1080, %s1085
        %v1087 = vpop.permute.xlu0 %1086
        %v1096 = vadd.f32 %v1035, %v1050
        %v1097 = vadd.f32 %v1036, %v1054
        %v1098 = vadd.f32 %v1037, %v1061
        %v1099 = vadd.f32 %v1038, %v1065
        %v1100 = vadd.f32 %v1039, %v1072
        %v1101 = vadd.f32 %v1040, %v1076
        %v1102 = vadd.f32 %v1041, %v1083
        %v1103 = vadd.f32 %v1042, %v1087
        %1112 = vset.pattern.permute.xlu0 0
        %1113 = vperm.xlu0 %1112, %v1096
        %v1114 = vpop.permute.xlu0 %1113
        %1115 = vset.pattern.permute.xlu0 0
        %1116 = vperm.xlu0 %1115, %v1097
        %v1117 = vpop.permute.xlu0 %1116
        %1118 = vset.pattern.permute.xlu0 0
        %1119 = vperm.xlu0 %1118, %v1098
        %v1120 = vpop.permute.xlu0 %1119
        %1121 = vset.pattern.permute.xlu0 0
        %1122 = vperm.xlu0 %1121, %v1099
        %v1123 = vpop.permute.xlu0 %1122
        %1124 = vset.pattern.permute.xlu0 0
        %1125 = vperm.xlu0 %1124, %v1100
        %v1126 = vpop.permute.xlu0 %1125
        %1127 = vset.pattern.permute.xlu0 0
        %1128 = vperm.xlu0 %1127, %v1101
        %v1129 = vpop.permute.xlu0 %1128
        %1130 = vset.pattern.permute.xlu0 0
        %1131 = vperm.xlu0 %1130, %v1102
        %v1132 = vpop.permute.xlu0 %1131
        %1133 = vset.pattern.permute.xlu0 0
        %1134 = vperm.xlu0 %1133, %v1103
        %v1135 = vpop.permute.xlu0 %1134
        %v1136 = vlaneseq
        %v1137 = vand.u32 %v1136, 127
        %v1138 = vlaneseq
        %v1139 = vshrl.u32 %v1138, 7
        %v1140 = vsub.s32 %v1137, %v1139
        %v1141 = vrot.slane %v1114, %v1140
        %v1142 = vadd.s32 %v1137, 4294967288
        %v1143 = vlaneseq
        %v1144 = vshrl.u32 %v1143, 7
        %v1145 = vsub.s32 %v1142, %v1144
        %v1146 = vrot.slane %v1117, %v1145
        %vm1147 = vcmask 130112
        %v1148 = vsel %vm1147, %v1146, %v1141
        %v1149 = vlaneseq
        %v1150 = vshrl.u32 %v1149, 7
        %v1151 = vsub.s32 %v1137, %v1150
        %v1152 = vrot.slane %v1120, %v1151
        %v1153 = vlaneseq
        %v1154 = vshrl.u32 %v1153, 7
        %v1155 = vsub.s32 %v1142, %v1154
        %v1156 = vrot.slane %v1123, %v1155
        %v1157 = vsel %vm1147, %v1156, %v1152
        %v1158 = vlaneseq
        %v1159 = vshrl.u32 %v1158, 7
        %v1160 = vsub.s32 %v1137, %v1159
        %v1161 = vrot.slane %v1126, %v1160
        %v1162 = vlaneseq
        %v1163 = vshrl.u32 %v1162, 7
        %v1164 = vsub.s32 %v1142, %v1163
        %v1165 = vrot.slane %v1129, %v1164
        %v1166 = vsel %vm1147, %v1165, %v1161
        %v1167 = vlaneseq
        %v1168 = vshrl.u32 %v1167, 7
        %v1169 = vsub.s32 %v1137, %v1168
        %v1170 = vrot.slane %v1132, %v1169
        %v1171 = vlaneseq
        %v1172 = vshrl.u32 %v1171, 7
        %v1173 = vsub.s32 %v1142, %v1172
        %v1174 = vrot.slane %v1135, %v1173
        %v1175 = vsel %vm1147, %v1174, %v1170
        %vm1176 = vcmask 1041409
        %v1177 = vsel %vm1176, %v1157, %v1148
        %vm1178 = vcmask 1042434
        %v1179 = vsel %vm1178, %v1166, %v1177
        %vm1180 = vcmask 1043459
        %v1181 = vsel %vm1180, %v1175, %v1179
        %vm1183 = vcmask 125952
        %v1184 = vsel %vm1183, %v1181, -inf
        %1185 = vmax.xlane.f32.xlu0 %v1184
        %v1186 = vpop.xlane.xlu0 %1185
        %v1188 = vlaneseq
        %v1189 = vshrl.u32 %v1188, 7
        %v1190 = vsub.s32 0, %v1189
        %v1191 = vrot.slane %v1186, %v1190
        %v1192 = vlaneseq
        %v1193 = vshrl.u32 %v1192, 7
        %v1194 = vsub.s32 1, %v1193
        %v1195 = vrot.slane %v1186, %v1194
        %v1196 = vlaneseq
        %v1197 = vshrl.u32 %v1196, 7
        %v1198 = vsub.s32 2, %v1197
        %v1199 = vrot.slane %v1186, %v1198
        %v1200 = vlaneseq
        %v1201 = vshrl.u32 %v1200, 7
        %v1202 = vsub.s32 3, %v1201
        %v1203 = vrot.slane %v1186, %v1202
        %v1208 = vsub.f32 %v1096, %v1191
        %v1209 = vsub.f32 %v1097, %v1191
        %v1210 = vsub.f32 %v1098, %v1195
        %v1211 = vsub.f32 %v1099, %v1195
        %v1212 = vsub.f32 %v1100, %v1199
        %v1213 = vsub.f32 %v1101, %v1199
        %v1214 = vsub.f32 %v1102, %v1203
        %v1215 = vsub.f32 %v1103, %v1203
        %v1216 = vmul.f32 %v1208, 1.442695
        %v1217 = vpow.pop %v1216
        %v1218 = vmul.f32 %v1209, 1.442695
        %v1219 = vpow.pop %v1218
        %v1220 = vmul.f32 %v1210, 1.442695
        %v1221 = vpow.pop %v1220
        %v1222 = vmul.f32 %v1211, 1.442695
        %v1223 = vpow.pop %v1222
        %v1224 = vmul.f32 %v1212, 1.442695
        %v1225 = vpow.pop %v1224
        %v1226 = vmul.f32 %v1213, 1.442695
        %v1227 = vpow.pop %v1226
        %v1228 = vmul.f32 %v1214, 1.442695
        %v1229 = vpow.pop %v1228
        %v1230 = vmul.f32 %v1215, 1.442695
        %v1231 = vpow.pop %v1230
        %1240 = vset.pattern.permute.xlu0 0
        %1241 = vperm.xlu0 %1240, %v1217
        %v1242 = vpop.permute.xlu0 %1241
        %1243 = vset.pattern.permute.xlu0 0
        %1244 = vperm.xlu0 %1243, %v1219
        %v1245 = vpop.permute.xlu0 %1244
        %1246 = vset.pattern.permute.xlu0 0
        %1247 = vperm.xlu0 %1246, %v1221
        %v1248 = vpop.permute.xlu0 %1247
        %1249 = vset.pattern.permute.xlu0 0
        %1250 = vperm.xlu0 %1249, %v1223
        %v1251 = vpop.permute.xlu0 %1250
        %1252 = vset.pattern.permute.xlu0 0
        %1253 = vperm.xlu0 %1252, %v1225
        %v1254 = vpop.permute.xlu0 %1253
        %1255 = vset.pattern.permute.xlu0 0
        %1256 = vperm.xlu0 %1255, %v1227
        %v1257 = vpop.permute.xlu0 %1256
        %1258 = vset.pattern.permute.xlu0 0
        %1259 = vperm.xlu0 %1258, %v1229
        %v1260 = vpop.permute.xlu0 %1259
        %1261 = vset.pattern.permute.xlu0 0
        %1262 = vperm.xlu0 %1261, %v1231
        %v1263 = vpop.permute.xlu0 %1262
        %v1264 = vlaneseq
        %v1265 = vshrl.u32 %v1264, 7
        %v1266 = vsub.s32 %v1137, %v1265
        %v1267 = vrot.slane %v1242, %v1266
        %v1268 = vlaneseq
        %v1269 = vshrl.u32 %v1268, 7
        %v1270 = vsub.s32 %v1142, %v1269
        %v1271 = vrot.slane %v1245, %v1270
        %v1272 = vsel %vm1147, %v1271, %v1267
        %v1273 = vlaneseq
        %v1274 = vshrl.u32 %v1273, 7
        %v1275 = vsub.s32 %v1137, %v1274
        %v1276 = vrot.slane %v1248, %v1275
        %v1277 = vlaneseq
        %v1278 = vshrl.u32 %v1277, 7
        %v1279 = vsub.s32 %v1142, %v1278
        %v1280 = vrot.slane %v1251, %v1279
        %v1281 = vsel %vm1147, %v1280, %v1276
        %v1282 = vlaneseq
        %v1283 = vshrl.u32 %v1282, 7
        %v1284 = vsub.s32 %v1137, %v1283
        %v1285 = vrot.slane %v1254, %v1284
        %v1286 = vlaneseq
        %v1287 = vshrl.u32 %v1286, 7
        %v1288 = vsub.s32 %v1142, %v1287
        %v1289 = vrot.slane %v1257, %v1288
        %v1290 = vsel %vm1147, %v1289, %v1285
        %v1291 = vlaneseq
        %v1292 = vshrl.u32 %v1291, 7
        %v1293 = vsub.s32 %v1137, %v1292
        %v1294 = vrot.slane %v1260, %v1293
        %v1295 = vlaneseq
        %v1296 = vshrl.u32 %v1295, 7
        %v1297 = vsub.s32 %v1142, %v1296
        %v1298 = vrot.slane %v1263, %v1297
        %v1299 = vsel %vm1147, %v1298, %v1294
        %v1300 = vsel %vm1176, %v1281, %v1272
        %v1301 = vsel %vm1178, %v1290, %v1300
        %v1302 = vsel %vm1180, %v1299, %v1301
        %v1304 = vsel %vm1183, %v1302, 0.0
        %1305 = vadd.xlane.f32.xlu0 %v1304
        %v1306 = vpop.xlane.xlu0 %1305
        %v1307 = vrcp.pop %v1306
        %v1309 = vlaneseq
        %v1310 = vshrl.u32 %v1309, 7
        %v1311 = vsub.s32 0, %v1310
        %v1312 = vrot.slane %v1307, %v1311
        %v1313 = vlaneseq
        %v1314 = vshrl.u32 %v1313, 7
        %v1315 = vsub.s32 1, %v1314
        %v1316 = vrot.slane %v1307, %v1315
        %v1317 = vlaneseq
        %v1318 = vshrl.u32 %v1317, 7
        %v1319 = vsub.s32 2, %v1318
        %v1320 = vrot.slane %v1307, %v1319
        %v1321 = vlaneseq
        %v1322 = vshrl.u32 %v1321, 7
        %v1323 = vsub.s32 3, %v1322
        %v1324 = vrot.slane %v1307, %v1323
        %v1329 = vmul.f32 %v1217, %v1312
        %v1330 = vmul.f32 %v1219, %v1312
        %v1331 = vmul.f32 %v1221, %v1316
        %v1332 = vmul.f32 %v1223, %v1316
        %v1333 = vmul.f32 %v1225, %v1320
        %v1334 = vmul.f32 %v1227, %v1320
        %v1335 = vmul.f32 %v1229, %v1324
        %v1336 = vmul.f32 %v1231, %v1324
        %v1337 = vpack.c.bf16 %v1330, %v1329
        %v1338 = vpack.c.bf16 %v1332, %v1331
        %v1339 = vpack.c.bf16 %v1334, %v1333
        %v1340 = vpack.c.bf16 %v1336, %v1335
        %1342 = vset.pattern.permute.xlu0 0
        %1343 = vperm.xlu0 %1342, %v1337
        %v1344 = vpop.permute.xlu0 %1343
        %1347 = vset.pattern.permute.xlu0 0
        %1348 = vperm.xlu0 %1347, %v1338
        %v1349 = vpop.permute.xlu0 %1348
        %1352 = vset.pattern.permute.xlu0 0
        %1353 = vperm.xlu0 %1352, %v1339
        %v1354 = vpop.permute.xlu0 %1353
        %1357 = vset.pattern.permute.xlu0 0
        %1358 = vperm.xlu0 %1357, %v1340
        %v1359 = vpop.permute.xlu0 %1358
        %v1365 = vmul.bf16 %v1344, %v894
        %v1366 = vmul.bf16 %v1349, %v895
        %v1367 = vmul.bf16 %v1354, %v896
        %v1368 = vmul.bf16 %v1359, %v897
        %v1369 = vunpack.c.l.bf16 %v1365
        %v1370 = vunpack.c.h.bf16 %v1365
        %v1371 = vunpack.c.l.bf16 %v1366
        %v1372 = vunpack.c.h.bf16 %v1366
        %v1373 = vunpack.c.l.bf16 %v1367
        %v1374 = vunpack.c.h.bf16 %v1367
        %v1375 = vunpack.c.l.bf16 %v1368
        %v1376 = vunpack.c.h.bf16 %v1368
        %v1377 = vsel %vm910, %v1369, 0.0
        %v1378 = vsel %vm910, %v1370, 0.0
        %v1379 = vadd.f32 %v1377, %v1378
        %v1380 = vrot.slane %v1379, 4
        %v1381 = vadd.f32 %v1379, %v1380
        %v1382 = vrot.slane %v1381, 2
        %v1383 = vadd.f32 %v1381, %v1382
        %v1384 = vrot.slane %v1383, 1
        %v1385 = vadd.f32 %v1383, %v1384
        %v1386 = vsel %vm910, %v1371, 0.0
        %v1387 = vsel %vm910, %v1372, 0.0
        %v1388 = vadd.f32 %v1386, %v1387
        %v1389 = vrot.slane %v1388, 4
        %v1390 = vadd.f32 %v1388, %v1389
        %v1391 = vrot.slane %v1390, 2
        %v1392 = vadd.f32 %v1390, %v1391
        %v1393 = vrot.slane %v1392, 1
        %v1394 = vadd.f32 %v1392, %v1393
        %v1395 = vsel %vm910, %v1373, 0.0
        %v1396 = vsel %vm910, %v1374, 0.0
        %v1397 = vadd.f32 %v1395, %v1396
        %v1398 = vrot.slane %v1397, 4
        %v1399 = vadd.f32 %v1397, %v1398
        %v1400 = vrot.slane %v1399, 2
        %v1401 = vadd.f32 %v1399, %v1400
        %v1402 = vrot.slane %v1401, 1
        %v1403 = vadd.f32 %v1401, %v1402
        %v1404 = vsel %vm910, %v1375, 0.0
        %v1405 = vsel %vm910, %v1376, 0.0
        %v1406 = vadd.f32 %v1404, %v1405
        %v1407 = vrot.slane %v1406, 4
        %v1408 = vadd.f32 %v1406, %v1407
        %v1409 = vrot.slane %v1408, 2
        %v1410 = vadd.f32 %v1408, %v1409
        %v1411 = vrot.slane %v1410, 1
        %v1412 = vadd.f32 %v1410, %v1411
        %v1413 = vpack.c.bf16 %v1385, %v1385
        %v1414 = vpack.c.bf16 %v1394, %v1394
        %v1415 = vpack.c.bf16 %v1403, %v1403
        %v1416 = vpack.c.bf16 %v1412, %v1412
        %v1418 = vlaneseq
        %v1419 = vshrl.u32 %v1418, 7
        %v1420 = vsub.s32 0, %v1419
        %v1421 = vrot.slane %v871, %v1420
        %v1427 = vunpack.c.l.b16 %v1413
        %v1428 = vunpack.c.l.b16 %v1414
        %v1429 = vunpack.c.l.b16 %v1415
        %v1430 = vunpack.c.l.b16 %v1416
        %v1431 = vsel %vm1176, %v1428, %v1427
        %v1432 = vsel %vm1178, %v1429, %v1431
        %v1433 = vsel %vm1180, %v1430, %v1432
        %v1434 = vpack.c.b16 %v1433, %v1433
        %v1439 = vunpack.c.l.b16 %v867
        %v1440 = vunpack.c.l.b16 %v868
        %v1441 = vunpack.c.l.b16 %v869
        %v1442 = vunpack.c.l.b16 %v870
        %v1443 = vpack.c.b16 %v1440, %v1439
        %v1444 = vpack.c.b16 %v1442, %v1441
        %v1448 = vsel %vm910, %v1434, 0
        %1450 = vmatprep.subr.bf16.mxu0 0
        %1451 = vmatpush1.bf16.msra.mxu0 %v1443
        %1452 = vmatprep.subr.bf16.mxu0 0
        %1453 = vmatpush1.bf16.msra.mxu0 %v1444
        %1454 = vmatprep.subr.bf16.mxu0 0
        %1455 = vmatpush1.bf16.msra.mxu0 0
        %1456 = vmatprep.subr.bf16.mxu0 0
        %1457 = vmatpush1.bf16.msra.mxu0 0
        %1458 = vmatprep.subr.bf16.mxu0 0
        %1459 = vmatpush1.bf16.msra.mxu0 0
        %1460 = vmatprep.subr.bf16.mxu0 0
        %1461 = vmatpush1.bf16.msra.mxu0 0
        %1462 = vmatprep.subr.bf16.mxu0 0
        %1463 = vmatpush1.bf16.msra.mxu0 0
        %1464 = vmatprep.subr.bf16.mxu0 0
        %1465 = vmatpush1.bf16.msra.mxu0 0
        %1466 = vmatprep.subr.bf16.mxu0 0
        %1467 = vmatpush1.bf16.msra.mxu0 0
        %1468 = vmatprep.subr.bf16.mxu0 0
        %1469 = vmatpush1.bf16.msra.mxu0 0
        %1470 = vmatprep.subr.bf16.mxu0 0
        %1471 = vmatpush1.bf16.msra.mxu0 0
        %1472 = vmatprep.subr.bf16.mxu0 0
        %1473 = vmatpush1.bf16.msra.mxu0 0
        %1474 = vmatprep.subr.bf16.mxu0 0
        %1475 = vmatpush1.bf16.msra.mxu0 0
        %1476 = vmatprep.subr.bf16.mxu0 0
        %1477 = vmatpush1.bf16.msra.mxu0 0
        %1478 = vmatprep.subr.bf16.mxu0 0
        %1479 = vmatpush1.bf16.msra.mxu0 0
        %1480 = vmatprep.subr.bf16.mxu0 0
        %1481 = vmatpush1.bf16.msra.mxu0 0
        %1482 = vmatprep.mubr.bf16.mxu0 0
        %1483 = vmatmul.mubr.bf16.gmra.mrb[0].mxu0 %v1448
        %v1484 = vpop.f32.mrb[0].mxu0
        %v1485 = vadd.f32 %v1421, %v1484
        %v1486 = vpop.f32.mrb[0].mxu0
        %v1487 = vpop.f32.mrb[0].mxu0
        %v1488 = vpop.f32.mrb[0].mxu0
        %1489 = vdwg.mxu0
        %p1490 = scmp.eq.s32.totalorder %s43, 0
        // Predicated region
        $region129: #{tpu_custom_call.1} parent=83 // pred_check
          %p1491 = pneg %p1490
        $region130: #{tpu_custom_call.1} parent=83 // pred_check_branch
          %1493 = sbr.rel (%p1491) target = $region132
        $region131: #{tpu_custom_call.1} parent=83 // pred_region
          %vm1494 = vcmask 257024
          %1495 = vst.msk [vmem:[#allocation19] sm:$0xf] %vm1494, %v1485
          %v1496 = vld [vmem:[%s848] sm:$0xf]
          %v1497 = vld [vmem:[%s848 + $0x4] sm:$0xf]
          %v1498 = vld [vmem:[%s848 + $0x8] sm:$0xf]
          %v1499 = vld [vmem:[%s848 + $0xc] sm:$0xf]
          %v1500 = vld [vmem:[#allocation15] sm:$0xf]
          %v1501 = vld [vmem:[%s10] sm:$0xf]
          %v1502 = vld [vmem:[%s10 + $0x4] sm:$0xf]
          %v1503 = vld [vmem:[%s10 + $0x8] sm:$0xf]
          %v1504 = vld [vmem:[%s10 + $0xc] sm:$0xf]
          %v1505 = vld [vmem:[#allocation16] sm:$0x1]
          %v1506 = vld [vmem:[#allocation18] sm:$0x1]
          %s1507 = sld [smem:[#allocation2]]
          %v1508 = vld [vmem:[%s14] sm:$0xf]
          %v1509 = vld [vmem:[%s14 + $0x4] sm:$0xf]
          %v1510 = vld [vmem:[%s14 + $0x8] sm:$0xf]
          %v1511 = vld [vmem:[%s14 + $0xc] sm:$0xf]
          %v1512 = vld [vmem:[%s15] sm:$0x1]
          %v1514 = vlaneseq
          %v1515 = vshrl.u32 %v1514, 7
          %v1516 = vsub.s32 0, %v1515
          %v1517 = vrot.slane %v1505, %v1516
          %v1523 = vunpack.c.l.b16 %v1496
          %v1524 = vunpack.c.l.b16 %v1497
          %v1525 = vunpack.c.l.b16 %v1498
          %v1526 = vunpack.c.l.b16 %v1499
          %v1527 = vpack.c.b16 %v1524, %v1523
          %v1528 = vpack.c.b16 %v1526, %v1525
          %v1533 = vunpack.c.l.b16 %v1501
          %v1534 = vunpack.c.l.b16 %v1502
          %v1535 = vunpack.c.l.b16 %v1503
          %v1536 = vunpack.c.l.b16 %v1504
          %v1537 = vpack.c.b16 %v1534, %v1533
          %v1538 = vpack.c.b16 %v1536, %v1535
          %v1542 = vsel %vm910, %v1527, 0
          %v1545 = vsel %vm910, %v1528, 0
          %1547 = vmatprep.subr.bf16.mxu0 0
          %1548 = vmatpush1.bf16.msra.mxu0 %v1537
          %1549 = vmatprep.subr.bf16.mxu0 0
          %1550 = vmatpush1.bf16.msra.mxu0 %v1538
          %1551 = vmatprep.subr.bf16.mxu0 0
          %1552 = vmatpush1.bf16.msra.mxu0 0
          %1553 = vmatprep.subr.bf16.mxu0 0
          %1554 = vmatpush1.bf16.msra.mxu0 0
          %1555 = vmatprep.subr.bf16.mxu0 0
          %1556 = vmatpush1.bf16.msra.mxu0 0
          %1557 = vmatprep.subr.bf16.mxu0 0
          %1558 = vmatpush1.bf16.msra.mxu0 0
          %1559 = vmatprep.subr.bf16.mxu0 0
          %1560 = vmatpush1.bf16.msra.mxu0 0
          %1561 = vmatprep.subr.bf16.mxu0 0
          %1562 = vmatpush1.bf16.msra.mxu0 0
          %1563 = vmatprep.subr.bf16.mxu0 0
          %1564 = vmatpush1.bf16.msra.mxu0 0
          %1565 = vmatprep.subr.bf16.mxu0 0
          %1566 = vmatpush1.bf16.msra.mxu0 0
          %1567 = vmatprep.subr.bf16.mxu0 0
          %1568 = vmatpush1.bf16.msra.mxu0 0
          %1569 = vmatprep.subr.bf16.mxu0 0
          %1570 = vmatpush1.bf16.msra.mxu0 0
          %1571 = vmatprep.subr.bf16.mxu0 0
          %1572 = vmatpush1.bf16.msra.mxu0 0
          %1573 = vmatprep.subr.bf16.mxu0 0
          %1574 = vmatpush1.bf16.msra.mxu0 0
          %1575 = vmatprep.subr.bf16.mxu0 0
          %1576 = vmatpush1.bf16.msra.mxu0 0
          %1577 = vmatprep.subr.bf16.mxu0 0
          %1578 = vmatpush1.bf16.msra.mxu0 0
          %1579 = vmatprep.mubr.bf16.mxu0 0
          %1580 = vmatmul.mubr.bf16.gmra.mrb[0].mxu0 %v1542
          %v1581 = vpop.f32.mrb[0].mxu0
          %v1582 = vadd.f32 %v1517, %v1581
          %v1583 = vpop.f32.mrb[0].mxu0
          %v1584 = vpop.f32.mrb[0].mxu0
          %v1585 = vadd.f32 %v1517, %v1584
          %v1586 = vpop.f32.mrb[0].mxu0
          %1587 = vmatprep.mubr.bf16.mxu0 0
          %1588 = vmatmul.mubr.bf16.gmra.mrb[0].mxu0 %v1545
          %v1589 = vpop.f32.mrb[0].mxu0
          %v1590 = vadd.f32 %v1517, %v1589
          %v1591 = vpop.f32.mrb[0].mxu0
          %v1592 = vpop.f32.mrb[0].mxu0
          %v1593 = vadd.f32 %v1517, %v1592
          %v1594 = vpop.f32.mrb[0].mxu0
          %1595 = vdwg.mxu0
          %v1596 = vmax.f32 %v1582, 0.0
          %v1597 = vmax.f32 %v1585, 0.0
          %v1598 = vmax.f32 %v1590, 0.0
          %v1599 = vmax.f32 %v1593, 0.0
          %v1601 = vlaneseq
          %v1602 = vshrl.u32 %v1601, 7
          %v1603 = vsub.s32 0, %v1602
          %v1604 = vrot.slane %v1506, %v1603
          %v1606 = vmul.f32 %v1596, %v1604
          %v1607 = vmul.f32 %v1597, %v1604
          %v1608 = vmul.f32 %v1598, %v1604
          %v1609 = vmul.f32 %v1599, %v1604
          %v1610 = vsel %vm910, %v1606, 0.0
          %1611 = vadd.xlane.f32.xlu0 %v1610
          %v1612 = vpop.xlane.xlu0 %1611
          %v1613 = vsel %vm910, %v1607, 0.0
          %1614 = vadd.xlane.f32.xlu0 %v1613
          %v1615 = vpop.xlane.xlu0 %1614
          %v1616 = vsel %vm910, %v1608, 0.0
          %1617 = vadd.xlane.f32.xlu0 %v1616
          %v1618 = vpop.xlane.xlu0 %1617
          %v1619 = vsel %vm910, %v1609, 0.0
          %1620 = vadd.xlane.f32.xlu0 %v1619
          %v1621 = vpop.xlane.xlu0 %1620
          %v1622 = vstv %s1507
          %v1623 = vadd.f32 %v1612, %v1622
          %v1624 = vadd.f32 %v1615, %v1622
          %v1625 = vadd.f32 %v1618, %v1622
          %v1626 = vadd.f32 %v1621, %v1622
          %v1628 = vlaneseq
          %v1629 = vshrl.u32 %v1628, 7
          %v1630 = vsub.s32 0, %v1629
          %v1631 = vrot.slane %v1500, %v1630
          %1633 = vbcast.lane.b32.xlu0 %v1631, 256
          %v1634 = vpop.permute.xlu0 %1633
          %v1635 = vlaneseq
          %v1636 = vshrl.u32 %v1635, 7
          %v1637 = vsub.s32 1, %v1636
          %v1638 = vrot.slane %v1500, %v1637
          %1640 = vbcast.lane.b32.xlu0 %v1638, 256
          %v1641 = vpop.permute.xlu0 %1640
          %v1642 = vlaneseq
          %v1643 = vshrl.u32 %v1642, 7
          %v1644 = vsub.s32 2, %v1643
          %v1645 = vrot.slane %v1500, %v1644
          %1647 = vbcast.lane.b32.xlu0 %v1645, 256
          %v1648 = vpop.permute.xlu0 %1647
          %v1649 = vlaneseq
          %v1650 = vshrl.u32 %v1649, 7
          %v1651 = vsub.s32 3, %v1650
          %v1652 = vrot.slane %v1500, %v1651
          %1654 = vbcast.lane.b32.xlu0 %v1652, 256
          %v1655 = vpop.permute.xlu0 %1654
          %v1660 = vadd.f32 %v1623, %v1634
          %v1661 = vadd.f32 %v1624, %v1641
          %v1662 = vadd.f32 %v1625, %v1648
          %v1663 = vadd.f32 %v1626, %v1655
          %1668 = vset.pattern.permute.xlu0 0
          %1669 = vperm.xlu0 %1668, %v1660
          %v1670 = vpop.permute.xlu0 %1669
          %1671 = vset.pattern.permute.xlu0 0
          %1672 = vperm.xlu0 %1671, %v1661
          %v1673 = vpop.permute.xlu0 %1672
          %1674 = vset.pattern.permute.xlu0 0
          %1675 = vperm.xlu0 %1674, %v1662
          %v1676 = vpop.permute.xlu0 %1675
          %1677 = vset.pattern.permute.xlu0 0
          %1678 = vperm.xlu0 %1677, %v1663
          %v1679 = vpop.permute.xlu0 %1678
          %v1680 = vlaneseq
          %v1681 = vshrl.u32 %v1680, 7
          %v1682 = vsub.s32 %v1137, %v1681
          %v1683 = vrot.slane %v1670, %v1682
          %v1684 = vlaneseq
          %v1685 = vshrl.u32 %v1684, 7
          %v1686 = vsub.s32 %v1137, %v1685
          %v1687 = vrot.slane %v1673, %v1686
          %v1688 = vlaneseq
          %v1689 = vshrl.u32 %v1688, 7
          %v1690 = vsub.s32 %v1137, %v1689
          %v1691 = vrot.slane %v1676, %v1690
          %v1692 = vlaneseq
          %v1693 = vshrl.u32 %v1692, 7
          %v1694 = vsub.s32 %v1137, %v1693
          %v1695 = vrot.slane %v1679, %v1694
          %v1696 = vsel %vm1176, %v1687, %v1683
          %v1697 = vsel %vm1178, %v1691, %v1696
          %v1698 = vsel %vm1180, %v1695, %v1697
          %vm1700 = vcmask 60416
          %v1701 = vsel %vm1700, %v1698, -inf
          %1702 = vmax.xlane.f32.xlu0 %v1701
          %v1703 = vpop.xlane.xlu0 %1702
          %v1705 = vlaneseq
          %v1706 = vshrl.u32 %v1705, 7
          %v1707 = vsub.s32 0, %v1706
          %v1708 = vrot.slane %v1703, %v1707
          %v1709 = vlaneseq
          %v1710 = vshrl.u32 %v1709, 7
          %v1711 = vsub.s32 1, %v1710
          %v1712 = vrot.slane %v1703, %v1711
          %v1713 = vlaneseq
          %v1714 = vshrl.u32 %v1713, 7
          %v1715 = vsub.s32 2, %v1714
          %v1716 = vrot.slane %v1703, %v1715
          %v1717 = vlaneseq
          %v1718 = vshrl.u32 %v1717, 7
          %v1719 = vsub.s32 3, %v1718
          %v1720 = vrot.slane %v1703, %v1719
          %v1725 = vsub.f32 %v1660, %v1708
          %v1726 = vsub.f32 %v1661, %v1712
          %v1727 = vsub.f32 %v1662, %v1716
          %v1728 = vsub.f32 %v1663, %v1720
          %v1729 = vmul.f32 %v1725, 1.442695
          %v1730 = vpow.pop %v1729
          %v1731 = vmul.f32 %v1726, 1.442695
          %v1732 = vpow.pop %v1731
          %v1733 = vmul.f32 %v1727, 1.442695
          %v1734 = vpow.pop %v1733
          %v1735 = vmul.f32 %v1728, 1.442695
          %v1736 = vpow.pop %v1735
          %1741 = vset.pattern.permute.xlu0 0
          %1742 = vperm.xlu0 %1741, %v1730
          %v1743 = vpop.permute.xlu0 %1742
          %1744 = vset.pattern.permute.xlu0 0
          %1745 = vperm.xlu0 %1744, %v1732
          %v1746 = vpop.permute.xlu0 %1745
          %1747 = vset.pattern.permute.xlu0 0
          %1748 = vperm.xlu0 %1747, %v1734
          %v1749 = vpop.permute.xlu0 %1748
          %1750 = vset.pattern.permute.xlu0 0
          %1751 = vperm.xlu0 %1750, %v1736
          %v1752 = vpop.permute.xlu0 %1751
          %v1753 = vlaneseq
          %v1754 = vshrl.u32 %v1753, 7
          %v1755 = vsub.s32 %v1137, %v1754
          %v1756 = vrot.slane %v1743, %v1755
          %v1757 = vlaneseq
          %v1758 = vshrl.u32 %v1757, 7
          %v1759 = vsub.s32 %v1137, %v1758
          %v1760 = vrot.slane %v1746, %v1759
          %v1761 = vlaneseq
          %v1762 = vshrl.u32 %v1761, 7
          %v1763 = vsub.s32 %v1137, %v1762
          %v1764 = vrot.slane %v1749, %v1763
          %v1765 = vlaneseq
          %v1766 = vshrl.u32 %v1765, 7
          %v1767 = vsub.s32 %v1137, %v1766
          %v1768 = vrot.slane %v1752, %v1767
          %v1769 = vsel %vm1176, %v1760, %v1756
          %v1770 = vsel %vm1178, %v1764, %v1769
          %v1771 = vsel %vm1180, %v1768, %v1770
          %v1773 = vsel %vm1700, %v1771, 0.0
          %1774 = vadd.xlane.f32.xlu0 %v1773
          %v1775 = vpop.xlane.xlu0 %1774
          %v1776 = vrcp.pop %v1775
          %v1778 = vlaneseq
          %v1779 = vshrl.u32 %v1778, 7
          %v1780 = vsub.s32 0, %v1779
          %v1781 = vrot.slane %v1776, %v1780
          %v1782 = vlaneseq
          %v1783 = vshrl.u32 %v1782, 7
          %v1784 = vsub.s32 1, %v1783
          %v1785 = vrot.slane %v1776, %v1784
          %v1786 = vlaneseq
          %v1787 = vshrl.u32 %v1786, 7
          %v1788 = vsub.s32 2, %v1787
          %v1789 = vrot.slane %v1776, %v1788
          %v1790 = vlaneseq
          %v1791 = vshrl.u32 %v1790, 7
          %v1792 = vsub.s32 3, %v1791
          %v1793 = vrot.slane %v1776, %v1792
          %v1798 = vmul.f32 %v1730, %v1781
          %v1799 = vmul.f32 %v1732, %v1785
          %v1800 = vmul.f32 %v1734, %v1789
          %v1801 = vmul.f32 %v1736, %v1793
          %v1802 = vpack.c.bf16 %v1798, %v1798
          %v1803 = vpack.c.bf16 %v1799, %v1799
          %v1804 = vpack.c.bf16 %v1800, %v1800
          %v1805 = vpack.c.bf16 %v1801, %v1801
          %1807 = vset.pattern.permute.xlu0 0
          %1808 = vperm.xlu0 %1807, %v1802
          %v1809 = vpop.permute.xlu0 %1808
          %1812 = vset.pattern.permute.xlu0 0
          %1813 = vperm.xlu0 %1812, %v1803
          %v1814 = vpop.permute.xlu0 %1813
          %1817 = vset.pattern.permute.xlu0 0
          %1818 = vperm.xlu0 %1817, %v1804
          %v1819 = vpop.permute.xlu0 %1818
          %1822 = vset.pattern.permute.xlu0 0
          %1823 = vperm.xlu0 %1822, %v1805
          %v1824 = vpop.permute.xlu0 %1823
          %v1826 = vmul.bf16 %v1809, %v1496
          %v1827 = vmul.bf16 %v1814, %v1497
          %v1828 = vmul.bf16 %v1819, %v1498
          %v1829 = vmul.bf16 %v1824, %v1499
          %v1830 = vunpack.c.l.bf16 %v1826
          %v1831 = vunpack.c.l.bf16 %v1827
          %v1832 = vunpack.c.l.bf16 %v1828
          %v1833 = vunpack.c.l.bf16 %v1829
          %v1834 = vsel %vm910, %v1830, 0.0
          %v1835 = vrot.slane %v1834, 4
          %v1836 = vadd.f32 %v1834, %v1835
          %v1837 = vrot.slane %v1836, 2
          %v1838 = vadd.f32 %v1836, %v1837
          %v1839 = vrot.slane %v1838, 1
          %v1840 = vadd.f32 %v1838, %v1839
          %v1841 = vsel %vm910, %v1831, 0.0
          %v1842 = vrot.slane %v1841, 4
          %v1843 = vadd.f32 %v1841, %v1842
          %v1844 = vrot.slane %v1843, 2
          %v1845 = vadd.f32 %v1843, %v1844
          %v1846 = vrot.slane %v1845, 1
          %v1847 = vadd.f32 %v1845, %v1846
          %v1848 = vsel %vm910, %v1832, 0.0
          %v1849 = vrot.slane %v1848, 4
          %v1850 = vadd.f32 %v1848, %v1849
          %v1851 = vrot.slane %v1850, 2
          %v1852 = vadd.f32 %v1850, %v1851
          %v1853 = vrot.slane %v1852, 1
          %v1854 = vadd.f32 %v1852, %v1853
          %v1855 = vsel %vm910, %v1833, 0.0
          %v1856 = vrot.slane %v1855, 4
          %v1857 = vadd.f32 %v1855, %v1856
          %v1858 = vrot.slane %v1857, 2
          %v1859 = vadd.f32 %v1857, %v1858
          %v1860 = vrot.slane %v1859, 1
          %v1861 = vadd.f32 %v1859, %v1860
          %v1862 = vpack.c.bf16 %v1840, %v1840
          %v1863 = vpack.c.bf16 %v1847, %v1847
          %v1864 = vpack.c.bf16 %v1854, %v1854
          %v1865 = vpack.c.bf16 %v1861, %v1861
          %v1867 = vlaneseq
          %v1868 = vshrl.u32 %v1867, 7
          %v1869 = vsub.s32 0, %v1868
          %v1870 = vrot.slane %v1512, %v1869
          %v1876 = vunpack.c.l.b16 %v1862
          %v1877 = vunpack.c.l.b16 %v1863
          %v1878 = vunpack.c.l.b16 %v1864
          %v1879 = vunpack.c.l.b16 %v1865
          %v1880 = vsel %vm1176, %v1877, %v1876
          %v1881 = vsel %vm1178, %v1878, %v1880
          %v1882 = vsel %vm1180, %v1879, %v1881
          %v1883 = vpack.c.b16 %v1882, %v1882
          %v1888 = vunpack.c.l.b16 %v1508
          %v1889 = vunpack.c.l.b16 %v1509
          %v1890 = vunpack.c.l.b16 %v1510
          %v1891 = vunpack.c.l.b16 %v1511
          %v1892 = vpack.c.b16 %v1889, %v1888
          %v1893 = vpack.c.b16 %v1891, %v1890
          %v1897 = vsel %vm910, %v1883, 0
          %1899 = vmatprep.subr.bf16.mxu0 0
          %1900 = vmatpush1.bf16.msra.mxu0 %v1892
          %1901 = vmatprep.subr.bf16.mxu0 0
          %1902 = vmatpush1.bf16.msra.mxu0 %v1893
          %1903 = vmatprep.subr.bf16.mxu0 0
          %1904 = vmatpush1.bf16.msra.mxu0 0
          %1905 = vmatprep.subr.bf16.mxu0 0
          %1906 = vmatpush1.bf16.msra.mxu0 0
          %1907 = vmatprep.subr.bf16.mxu0 0
          %1908 = vmatpush1.bf16.msra.mxu0 0
          %1909 = vmatprep.subr.bf16.mxu0 0
          %1910 = vmatpush1.bf16.msra.mxu0 0
          %1911 = vmatprep.subr.bf16.mxu0 0
          %1912 = vmatpush1.bf16.msra.mxu0 0
          %1913 = vmatprep.subr.bf16.mxu0 0
          %1914 = vmatpush1.bf16.msra.mxu0 0
          %1915 = vmatprep.subr.bf16.mxu0 0
          %1916 = vmatpush1.bf16.msra.mxu0 0
          %1917 = vmatprep.subr.bf16.mxu0 0
          %1918 = vmatpush1.bf16.msra.mxu0 0
          %1919 = vmatprep.subr.bf16.mxu0 0
          %1920 = vmatpush1.bf16.msra.mxu0 0
          %1921 = vmatprep.subr.bf16.mxu0 0
          %1922 = vmatpush1.bf16.msra.mxu0 0
          %1923 = vmatprep.subr.bf16.mxu0 0
          %1924 = vmatpush1.bf16.msra.mxu0 0
          %1925 = vmatprep.subr.bf16.mxu0 0
          %1926 = vmatpush1.bf16.msra.mxu0 0
          %1927 = vmatprep.subr.bf16.mxu0 0
          %1928 = vmatpush1.bf16.msra.mxu0 0
          %1929 = vmatprep.subr.bf16.mxu0 0
          %1930 = vmatpush1.bf16.msra.mxu0 0
          %1931 = vmatprep.mubr.bf16.mxu0 0
          %1932 = vmatmul.mubr.bf16.gmra.mrb[0].mxu0 %v1897
          %v1933 = vpop.f32.mrb[0].mxu0
          %v1934 = vadd.f32 %v1870, %v1933
          %v1935 = vpop.f32.mrb[0].mxu0
          %v1936 = vpop.f32.mrb[0].mxu0
          %v1937 = vpop.f32.mrb[0].mxu0
          %1938 = vdwg.mxu0
          %v1939 = vmul.f32 %v1934, %v1934
          %v1940 = vsel %vm1494, %v1939, 0.0
          %1941 = vadd.xlane.f32.xlu0 %v1940
          %v1942 = vpop.xlane.xlu0 %1941
          %v1943 = vmax.f32 %v1942, 1e-24
          %v1944 = vrsqrt.pop %v1943
          %v1945 = vmul.f32 %v1934, %v1944
          %1946 = vst.msk [vmem:[#allocation20] sm:$0xf] %vm1494, %v1945
        $region132: #{tpu_custom_call.1} parent=83 // pred_fallthru
          _
        %p1947 = scmp.gt.s32.totalorder %s43, 0
        // Predicated region
        $region133: #{tpu_custom_call.1} parent=83 // pred_check
          %p1948 = pneg %p1947
        $region134: #{tpu_custom_call.1} parent=83 // pred_check_branch
          %1950 = sbr.rel (%p1948) target = $region136
        $region135: #{tpu_custom_call.1} parent=83 // pred_region
          %v1951 = vld [vmem:[#allocation19] sm:$0xf]
          %v1952 = vadd.f32 %v1951, %v1485
          %vm1953 = vcmask 257024
          %1954 = vst.msk [vmem:[#allocation19] sm:$0xf] %vm1953, %v1952
        $region136: #{tpu_custom_call.1} parent=83 // pred_fallthru
          _
        %p1955 = scmp.eq.s32.totalorder %s43, 2
        // Predicated region
        $region137: #{tpu_custom_call.1} parent=83 // pred_check
          %p1956 = pneg %p1955
        $region138: #{tpu_custom_call.1} parent=83 // pred_check_branch
          %1958 = sbr.rel (%p1956) target = $region140
        $region139: #{tpu_custom_call.1} parent=83 // pred_region
          %v1959 = vld [vmem:[#allocation19] sm:$0xf]
          %v1960 = vmul.f32 %v1959, 0.57735026
          %v1961 = vmul.f32 %v1960, %v1960
          %vm1962 = vcmask 257024
          %v1963 = vsel %vm1962, %v1961, 0.0
          %1964 = vadd.xlane.f32.xlu0 %v1963
          %v1965 = vpop.xlane.xlu0 %1964
          %v1966 = vmax.f32 %v1965, 1e-24
          %v1967 = vrsqrt.pop %v1966
          %v1968 = vmul.f32 %v1960, %v1967
          %1969 = vst.msk [vmem:[#allocation19] sm:$0xf] %vm1962, %v1968
        $region140: #{tpu_custom_call.1} parent=83 // pred_fallthru
          _
        // Predicated region
        $region141: #{tpu_custom_call.1} parent=83 // pred_check
          %p1970 = pneg %p451
        $region142: #{tpu_custom_call.1} parent=83 // pred_check_branch
          %1972 = sbr.rel (%p1970) target = $region144
        $region143: #{tpu_custom_call.1} parent=83 // pred_region
          %s1974 = ssub.s32 64, 64
          %1975 = vsyncadd [#allocation5], %s1974
          %s1976 = smul.addr %s42, 64
          %s1977 = scalar_lea.hbm %s16, %s1976
          %s1979 = sshll.u32 [#allocation19], 4
          %s1980 = int_to_ptr.vmem [resolvable:$true] %s1979
          %1982 = dma.vmem_to_hbm [thread:$0]  %s1980, 64, %s1977, [#allocation5]
        $region144: #{tpu_custom_call.1} parent=83 // pred_fallthru
          _
        // Predicated region
        $region145: #{tpu_custom_call.1} parent=83 // pred_check
          %p1983 = pneg %p477
        $region146: #{tpu_custom_call.1} parent=83 // pred_check_branch
          %1985 = sbr.rel (%p1983) target = $region148
        $region147: #{tpu_custom_call.1} parent=83 // pred_region
          %s1987 = ssub.s32 64, 64
          %1988 = vsyncadd [#allocation21], %s1987
          %s1989 = smul.addr %s42, 64
          %s1990 = scalar_lea.hbm %s17, %s1989
          %s1992 = sshll.u32 [#allocation20], 4
          %s1993 = int_to_ptr.vmem [resolvable:$true] %s1992
          %1995 = dma.vmem_to_hbm [thread:$0]  %s1993, 64, %s1990, [#allocation21]
        $region148: #{tpu_custom_call.1} parent=83 // pred_fallthru
          _
        // Predicated region
        $region149: #{tpu_custom_call.1} parent=83 // pred_check
          %p1996 = pneg %p451
        $region150: #{tpu_custom_call.1} parent=83 // pred_check_branch
          %1998 = sbr.rel (%p1996) target = $region152
        $region151: #{tpu_custom_call.1} parent=83 // pred_region
          %1999 = dma.done [#allocation5], 64
        $region152: #{tpu_custom_call.1} parent=83 // pred_fallthru
          _
        // Predicated region
        $region153: #{tpu_custom_call.1} parent=83 // pred_check
          %p2000 = pneg %p477
        $region154: #{tpu_custom_call.1} parent=83 // pred_check_branch
          %2002 = sbr.rel (%p2000) target = $region156
        $region155: #{tpu_custom_call.1} parent=83 // pred_region
          %2003 = dma.done [#allocation21], 64
        $region156: #{tpu_custom_call.1} parent=83 // pred_fallthru
          _
      $region84: #{tpu_custom_call.1} parent=5 // pred_fallthru
        _
      %p2004 = scmp.le.s32.totalorder 2, %s33
      // Predicated region
      $region157: #{tpu_custom_call.1} parent=5 // pred_check
        %p2005 = pneg %p2004
      $region158: #{tpu_custom_call.1} parent=5 // pred_check_branch
        %2007 = sbr.rel (%p2005) target = $region160
      $region159: #{tpu_custom_call.1} parent=5 // pred_region
        %s2008 = ssub.s32 %s33, 2
      $region160: #{tpu_custom_call.1} parent=5 // pred_fallthru
        _
    $region6: #{tpu_custom_call.1} parent=1 // loop_footer
      %s37 = sadd.s32 1, %s33
    $region7: #{tpu_custom_call.1} parent=1 // loop_footer_branch
      %32 = sbr.rel target = $region3
    $region8: #{tpu_custom_call.1} parent=1 // loop_exit
      _
    %2009 = vsyncpa [#allocation4], 1
    %s2010 = scalar_lea.sflag [#allocation4], 1
    %2011 = vsyncpa %s2010, 1
    %2012 = vsyncpa [#allocation8], 1
    %2013 = vsyncpa [#allocation17], 1
    %2014 = vsyncpa [#allocation5], 1
    %s2015 = scalar_lea.sflag [#allocation5], 1
    %2016 = vsyncpa %s2015, 1
    %2017 = vsyncpa [#allocation21], 1
    %2018 = vsyncpa [#allocation6], 1
    %s2019 = scalar_lea.sflag [#allocation6], 1
    %2020 = vsyncpa %s2019, 1

</llo_original>
